<compile_context>
chip_gen: v7x
topology: tpu7x:2x2x1
jax: 0.10.0
libtpu: 0.0.40
codegen_flags: <defaults>
</compile_context>

<pallas_src>
import math
import jax
import jax.numpy as jnp
from jax.experimental import pallas as pl
from jax.experimental.pallas import tpu as pltpu


def gru_kernel(x_ref, h0_ref, wx3_ref, bx3_ref, whzr_ref, whu_ref,
               whead_ref, bhead_ref, out_ref, xp_scr, hall_scr):
    SB, E = x_ref.shape          # (S*B, E), time-major: row = t*B + b
    B, H = h0_ref.shape
    S = SB // B

    # ---- Phase 1: all x-side gate projections in one lane-dense matmul. ----
    # bx3 already contains (bzx+bzh | brx+brh | bux+buh), so the recurrent loop
    # below needs no bias adds (no per-iteration broadcast_in_dim).
    xp_scr[...] = (
        jnp.dot(x_ref[...], wx3_ref[...], preferred_element_type=jnp.float32)
        + bx3_ref[...]
    )

    # ---- Phase 2: recurrence; hidden state is the fori_loop carry. ----
    w_hzr = whzr_ref[...]        # (H, 2H)  fused [Wzh | Wrh]
    w_hu = whu_ref[...]          # (H, H)

    def step(t, h):
        off = pl.multiple_of(t * B, B)              # B == 8 -> sublane aligned
        xp_t = xp_scr[pl.ds(off, B), :]             # (B, GP) = [xz | xr | xu | pad]
        zr = jax.nn.sigmoid(
            jnp.dot(h, w_hzr, preferred_element_type=jnp.float32)
            + xp_t[:, :2 * H])
        z = zr[:, :H]
        r = zr[:, H:2 * H]
        hc = jnp.tanh(
            jnp.dot(r * h, w_hu, preferred_element_type=jnp.float32)
            + xp_t[:, 2 * H:3 * H])
        h_new = (1.0 - z) * h + z * hc
        hall_scr[pl.ds(off, B), :] = h_new
        return h_new

    h0 = h0_ref[...].astype(jnp.float32)
    jax.lax.fori_loop(0, S, step, h0, unroll=True)

    # ---- Phase 3: folded classifier head, one lane-dense matmul. ----
    out_ref[...] = (
        jnp.dot(hall_scr[...], whead_ref[...], preferred_element_type=jnp.float32)
        + bhead_ref[...]
    )


def gru_forward(x_ids, params, h0):
    """x_ids: [B, S] int32 token ids. Returns [B, S, num_classes]."""
    embed = params["embed"]                     # (V, E)
    B, S = x_ids.shape
    E = embed.shape[1]
    H = params["wzh"].shape[0]
    C = params["wc"].shape[1]
    GP = pl.cdiv(3 * H, 128) * 128              # lane-padded fused gate width
    CP = pl.cdiv(C, 128) * 128                  # lane-padded class width
    f32 = jnp.float32

    # Embedding lookup (gather) stays in plain JAX glue.
    x_embed = embed[x_ids]                                  # (B, S, E)
    x_tm = jnp.transpose(x_embed, (1, 0, 2)).reshape(S * B, E)  # time-major

    # One-time weight packing / folding (wrapper-side, outside the kernel).
    w_x3 = jnp.zeros((E, GP), f32).at[:, :3 * H].set(
        jnp.concatenate([params["wzx"], params["wrx"], params["wux"]], axis=1))
    b_x3 = jnp.zeros((1, GP), f32).at[:, :3 * H].set(
        jnp.concatenate([params["bzx"] + params["bzh"],
                         params["brx"] + params["brh"],
                         params["bux"] + params["buh"]], axis=1))
    w_hzr = jnp.concatenate([params["wzh"], params["wrh"]], axis=1)   # (H, 2H)
    w_hu = params["wuh"]                                              # (H, H)
    w_head = jnp.zeros((H, CP), f32).at[:, :C].set(params["wxh"] @ params["wc"])
    b_head = jnp.zeros((1, CP), f32).at[:, :C].set(
        params["bxh"] @ params["wc"] + params["bc"])

    vmem_specs = [pl.BlockSpec(memory_space=pltpu.MemorySpace.VMEM)
                  for _ in range(8)]

    out = pl.pallas_call(
        gru_kernel,
        out_shape=jax.ShapeDtypeStruct((S * B, CP), f32),
        in_specs=vmem_specs,
        out_specs=pl.BlockSpec(memory_space=pltpu.MemorySpace.VMEM),
        scratch_shapes=[pltpu.VMEM((S * B, GP), f32),   # x-side gate projections
                        pltpu.VMEM((S * B, H), f32)],   # all hidden states
    )(x_tm, h0, w_x3, b_x3, w_hzr, w_hu, w_head, b_head)

    # (S*B, CP) -> (B, S, C)
    return jnp.transpose(out[:, :C].reshape(S, B, C), (1, 0, 2))


def gru_reference(x_ids, params, h0):
    """Plain-JAX reference mirroring the PyTorch GRUCell/GRUModel forward."""
    x_embed = params["embed"][x_ids]            # (B, S, E)
    h = h0
    outs = []
    for t in range(x_ids.shape[1]):
        xt = x_embed[:, t, :]
        z = jax.nn.sigmoid(h @ params["wzh"] + params["bzh"]
                           + xt @ params["wzx"] + params["bzx"])
        r = jax.nn.sigmoid(h @ params["wrh"] + params["brh"]
                           + xt @ params["wrx"] + params["brx"])
        hc = jnp.tanh((r * h) @ params["wuh"] + params["buh"]
                      + xt @ params["wux"] + params["bux"])
        h = (1.0 - z) * h + z * hc
        y = h @ params["wxh"] + params["bxh"]
        outs.append((y @ params["wc"] + params["bc"])[:, None, :])
    return jnp.concatenate(outs, axis=1)


def init_params(key, num_vocab, embed_dim, h_dim, x_dim, num_classes):
    """Deterministic init mirroring nn.Linear / nn.Embedding shapes.
    Linear weights are stored pre-transposed as (in, out) so the kernel does x @ W."""
    keys = jax.random.split(key, 20)
    ki = iter(range(20))

    def linear(in_dim, out_dim):
        bound = 1.0 / math.sqrt(in_dim)
        w = jax.random.uniform(keys[next(ki)], (in_dim, out_dim),
                               jnp.float32, -bound, bound)
        b = jax.random.uniform(keys[next(ki)], (1, out_dim),
                               jnp.float32, -bound, bound)
        return w, b

    p = {}
    p["embed"] = jax.random.normal(keys[next(ki)], (num_vocab, embed_dim), jnp.float32)
    p["wzh"], p["bzh"] = linear(h_dim, h_dim)
    p["wzx"], p["bzx"] = linear(embed_dim, h_dim)
    p["wrh"], p["brh"] = linear(h_dim, h_dim)
    p["wrx"], p["brx"] = linear(embed_dim, h_dim)
    p["wuh"], p["buh"] = linear(h_dim, h_dim)
    p["wux"], p["bux"] = linear(embed_dim, h_dim)
    p["wxh"], p["bxh"] = linear(h_dim, x_dim)
    p["wc"], p["bc"] = linear(x_dim, num_classes)
    return p


if __name__ == "__main__":
    # Small config consistent with the module:
    B = 8            # batch
    S = 8            # seq_len
    V = 50           # num_vocab
    E = 16           # embed_dim
    H = 32           # h_dim
    X = 32           # x_dim
    C = 4            # num_classes

    key = jax.random.PRNGKey(0)
    k_par, k_ids, k_h0 = jax.random.split(key, 3)

    params = init_params(k_par, V, E, H, X, C)
    x_ids = jax.random.randint(k_ids, (B, S), 0, V, dtype=jnp.int32)

    # TODO(synk): PyTorch's init_hidden uses kaiming_uniform_ on an empty tensor
    # (random each call); here we use a deterministic kaiming-uniform-style init.
    bound = math.sqrt(6.0 / H)
    h0 = jax.random.uniform(k_h0, (B, H), jnp.float32, -bound, bound)

    out = gru_forward(x_ids, params, h0)
    jax.block_until_ready(out)
    assert out.shape == (B, S, C), out.shape

    ref = gru_reference(x_ids, params, h0)
    assert jnp.allclose(out, ref, rtol=1e-4, atol=1e-4), \
        float(jnp.max(jnp.abs(out - ref)))

    print("KERNEL_OK")
</pallas_src>

<mosaic_0001>
module attributes {stable_mosaic.version = 11 : i64} {
  func.func @gru_kernel(%arg0: memref<64x16xf32, #tpu.memory_space<vmem>>, %arg1: memref<8x32xf32, #tpu.memory_space<vmem>>, %arg2: memref<16x128xf32, #tpu.memory_space<vmem>>, %arg3: memref<1x128xf32, #tpu.memory_space<vmem>>, %arg4: memref<32x64xf32, #tpu.memory_space<vmem>>, %arg5: memref<32x32xf32, #tpu.memory_space<vmem>>, %arg6: memref<32x128xf32, #tpu.memory_space<vmem>>, %arg7: memref<1x128xf32, #tpu.memory_space<vmem>>, %arg8: memref<64x128xf32, #tpu.memory_space<vmem>>, %arg9: memref<64x128xf32, #tpu.memory_space<vmem>>, %arg10: memref<64x32xf32, #tpu.memory_space<vmem>>) attributes {dimension_semantics = [], scalar_prefetch = 0 : i64, scratch_operands = 2 : i64, tpu.core_type = #tpu.core_type<tc>} {
    %c0 = arith.constant 0 : index
    %c0_0 = arith.constant 0 : index
    %0 = vector.load %arg0[%c0, %c0_0] : memref<64x16xf32, #tpu.memory_space<vmem>>, vector<64x16xf32>
    %c0_1 = arith.constant 0 : index
    %c0_2 = arith.constant 0 : index
    %1 = vector.load %arg2[%c0_1, %c0_2] : memref<16x128xf32, #tpu.memory_space<vmem>>, vector<16x128xf32>
    %cst = arith.constant dense<0.000000e+00> : vector<64x128xf32>
    %2 = tpu.matmul %0, %1, %cst {dimension_numbers = #tpu.dot_dimension_numbers<[1], [0], [0], [1], [0, 0, 1, 1], [], []>} : vector<64x16xf32>, vector<16x128xf32>, vector<64x128xf32> -> vector<64x128xf32>
    %c0_3 = arith.constant 0 : index
    %c0_4 = arith.constant 0 : index
    %3 = vector.load %arg3[%c0_3, %c0_4] : memref<1x128xf32, #tpu.memory_space<vmem>>, vector<1x128xf32>
    %4 = vector.broadcast %3 : vector<1x128xf32> to vector<64x128xf32>
    %5 = arith.addf %2, %4 : vector<64x128xf32>
    %c0_5 = arith.constant 0 : index
    %c0_6 = arith.constant 0 : index
    %6 = vector.load %arg9[%c0_5, %c0_6] : memref<64x128xf32, #tpu.memory_space<vmem>>, vector<64x128xf32>
    tpu.vector_store %arg9[%c0_5, %c0_6], %5 {strides = array<i32>} : memref<64x128xf32, #tpu.memory_space<vmem>>, vector<64x128xf32>,
    %c0_7 = arith.constant 0 : index
    %c0_8 = arith.constant 0 : index
    %7 = vector.load %arg4[%c0_7, %c0_8] : memref<32x64xf32, #tpu.memory_space<vmem>>, vector<32x64xf32>
    %c0_9 = arith.constant 0 : index
    %c0_10 = arith.constant 0 : index
    %8 = vector.load %arg5[%c0_9, %c0_10] : memref<32x32xf32, #tpu.memory_space<vmem>>, vector<32x32xf32>
    %c0_11 = arith.constant 0 : index
    %c0_12 = arith.constant 0 : index
    %9 = vector.load %arg1[%c0_11, %c0_12] : memref<8x32xf32, #tpu.memory_space<vmem>>, vector<8x32xf32>
    %c0_i32 = arith.constant 0 : i32
    %c8_i32 = arith.constant 8 : i32
    %10 = arith.muli %c0_i32, %c8_i32 : i32
    %11 = tpu.assume_multiple %10, 8 : i32
    %12 = arith.index_cast %11 : i32 to index
    %c0_13 = arith.constant 0 : index
    %13 = vector.load %arg9[%12, %c0_13] : memref<64x128xf32, #tpu.memory_space<vmem>>, vector<8x128xf32>
    %cst_14 = arith.constant dense<0.000000e+00> : vector<8x64xf32>
    %14 = tpu.matmul %9, %7, %cst_14 {dimension_numbers = #tpu.dot_dimension_numbers<[1], [0], [0], [1], [0, 0, 1, 1], [], []>} : vector<8x32xf32>, vector<32x64xf32>, vector<8x64xf32> -> vector<8x64xf32>
    %15 = vector.extract_strided_slice %13 {offsets = [0, 0], sizes = [8, 64], strides = [1, 1]} : vector<8x128xf32> to vector<8x64xf32>
    %16 = arith.addf %14, %15 : vector<8x64xf32>
    %17 = arith.negf %16 : vector<8x64xf32>
    %18 = math.exp %17 : vector<8x64xf32>
    %cst_15 = arith.constant 1.000000e+00 : f32
    %19 = vector.broadcast %cst_15 : f32 to vector<8x64xf32>
    %20 = arith.addf %19, %18 : vector<8x64xf32>
    %21 = arith.divf %19, %20 : vector<8x64xf32>
    %22 = vector.extract_strided_slice %21 {offsets = [0, 0], sizes = [8, 32], strides = [1, 1]} : vector<8x64xf32> to vector<8x32xf32>
    %23 = vector.extract_strided_slice %21 {offsets = [0, 32], sizes = [8, 32], strides = [1, 1]} : vector<8x64xf32> to vector<8x32xf32>
    %24 = arith.mulf %23, %9 : vector<8x32xf32>
    %cst_16 = arith.constant dense<0.000000e+00> : vector<8x32xf32>
    %25 = tpu.matmul %24, %8, %cst_16 {dimension_numbers = #tpu.dot_dimension_numbers<[1], [0], [0], [1], [0, 0, 1, 1], [], []>} : vector<8x32xf32>, vector<32x32xf32>, vector<8x32xf32> -> vector<8x32xf32>
    %26 = vector.extract_strided_slice %13 {offsets = [0, 64], sizes = [8, 32], strides = [1, 1]} : vector<8x128xf32> to vector<8x32xf32>
    %27 = arith.addf %25, %26 : vector<8x32xf32>
    %28 = math.tanh %27 : vector<8x32xf32>
    %cst_17 = arith.constant 1.000000e+00 : f32
    %29 = vector.broadcast %cst_17 : f32 to vector<8x32xf32>
    %30 = arith.subf %29, %22 : vector<8x32xf32>
    %31 = arith.mulf %30, %9 : vector<8x32xf32>
    %32 = arith.mulf %22, %28 : vector<8x32xf32>
    %33 = arith.addf %31, %32 : vector<8x32xf32>
    %34 = arith.index_cast %11 : i32 to index
    %c0_18 = arith.constant 0 : index
    %35 = vector.load %arg10[%34, %c0_18] : memref<64x32xf32, #tpu.memory_space<vmem>>, vector<8x32xf32>
    tpu.vector_store %arg10[%34, %c0_18], %33 {strides = array<i32>} : memref<64x32xf32, #tpu.memory_space<vmem>>, vector<8x32xf32>,
    %c1_i32 = arith.constant 1 : i32
    %c8_i32_19 = arith.constant 8 : i32
    %36 = arith.muli %c1_i32, %c8_i32_19 : i32
    %37 = tpu.assume_multiple %36, 8 : i32
    %38 = arith.index_cast %37 : i32 to index
    %c0_20 = arith.constant 0 : index
    %39 = vector.load %arg9[%38, %c0_20] : memref<64x128xf32, #tpu.memory_space<vmem>>, vector<8x128xf32>
    %cst_21 = arith.constant dense<0.000000e+00> : vector<8x64xf32>
    %40 = tpu.matmul %33, %7, %cst_21 {dimension_numbers = #tpu.dot_dimension_numbers<[1], [0], [0], [1], [0, 0, 1, 1], [], []>} : vector<8x32xf32>, vector<32x64xf32>, vector<8x64xf32> -> vector<8x64xf32>
    %41 = vector.extract_strided_slice %39 {offsets = [0, 0], sizes = [8, 64], strides = [1, 1]} : vector<8x128xf32> to vector<8x64xf32>
    %42 = arith.addf %40, %41 : vector<8x64xf32>
    %43 = arith.negf %42 : vector<8x64xf32>
    %44 = math.exp %43 : vector<8x64xf32>
    %cst_22 = arith.constant 1.000000e+00 : f32
    %45 = vector.broadcast %cst_22 : f32 to vector<8x64xf32>
    %46 = arith.addf %45, %44 : vector<8x64xf32>
    %47 = arith.divf %45, %46 : vector<8x64xf32>
    %48 = vector.extract_strided_slice %47 {offsets = [0, 0], sizes = [8, 32], strides = [1, 1]} : vector<8x64xf32> to vector<8x32xf32>
    %49 = vector.extract_strided_slice %47 {offsets = [0, 32], sizes = [8, 32], strides = [1, 1]} : vector<8x64xf32> to vector<8x32xf32>
    %50 = arith.mulf %49, %33 : vector<8x32xf32>
    %cst_23 = arith.constant dense<0.000000e+00> : vector<8x32xf32>
    %51 = tpu.matmul %50, %8, %cst_23 {dimension_numbers = #tpu.dot_dimension_numbers<[1], [0], [0], [1], [0, 0, 1, 1], [], []>} : vector<8x32xf32>, vector<32x32xf32>, vector<8x32xf32> -> vector<8x32xf32>
    %52 = vector.extract_strided_slice %39 {offsets = [0, 64], sizes = [8, 32], strides = [1, 1]} : vector<8x128xf32> to vector<8x32xf32>
    %53 = arith.addf %51, %52 : vector<8x32xf32>
    %54 = math.tanh %53 : vector<8x32xf32>
    %cst_24 = arith.constant 1.000000e+00 : f32
    %55 = vector.broadcast %cst_24 : f32 to vector<8x32xf32>
    %56 = arith.subf %55, %48 : vector<8x32xf32>
    %57 = arith.mulf %56, %33 : vector<8x32xf32>
    %58 = arith.mulf %48, %54 : vector<8x32xf32>
    %59 = arith.addf %57, %58 : vector<8x32xf32>
    %60 = arith.index_cast %37 : i32 to index
    %c0_25 = arith.constant 0 : index
    %61 = vector.load %arg10[%60, %c0_25] : memref<64x32xf32, #tpu.memory_space<vmem>>, vector<8x32xf32>
    tpu.vector_store %arg10[%60, %c0_25], %59 {strides = array<i32>} : memref<64x32xf32, #tpu.memory_space<vmem>>, vector<8x32xf32>,
    %c2_i32 = arith.constant 2 : i32
    %c8_i32_26 = arith.constant 8 : i32
    %62 = arith.muli %c2_i32, %c8_i32_26 : i32
    %63 = tpu.assume_multiple %62, 8 : i32
    %64 = arith.index_cast %63 : i32 to index
    %c0_27 = arith.constant 0 : index
    %65 = vector.load %arg9[%64, %c0_27] : memref<64x128xf32, #tpu.memory_space<vmem>>, vector<8x128xf32>
    %cst_28 = arith.constant dense<0.000000e+00> : vector<8x64xf32>
    %66 = tpu.matmul %59, %7, %cst_28 {dimension_numbers = #tpu.dot_dimension_numbers<[1], [0], [0], [1], [0, 0, 1, 1], [], []>} : vector<8x32xf32>, vector<32x64xf32>, vector<8x64xf32> -> vector<8x64xf32>
    %67 = vector.extract_strided_slice %65 {offsets = [0, 0], sizes = [8, 64], strides = [1, 1]} : vector<8x128xf32> to vector<8x64xf32>
    %68 = arith.addf %66, %67 : vector<8x64xf32>
    %69 = arith.negf %68 : vector<8x64xf32>
    %70 = math.exp %69 : vector<8x64xf32>
    %cst_29 = arith.constant 1.000000e+00 : f32
    %71 = vector.broadcast %cst_29 : f32 to vector<8x64xf32>
    %72 = arith.addf %71, %70 : vector<8x64xf32>
    %73 = arith.divf %71, %72 : vector<8x64xf32>
    %74 = vector.extract_strided_slice %73 {offsets = [0, 0], sizes = [8, 32], strides = [1, 1]} : vector<8x64xf32> to vector<8x32xf32>
    %75 = vector.extract_strided_slice %73 {offsets = [0, 32], sizes = [8, 32], strides = [1, 1]} : vector<8x64xf32> to vector<8x32xf32>
    %76 = arith.mulf %75, %59 : vector<8x32xf32>
    %cst_30 = arith.constant dense<0.000000e+00> : vector<8x32xf32>
    %77 = tpu.matmul %76, %8, %cst_30 {dimension_numbers = #tpu.dot_dimension_numbers<[1], [0], [0], [1], [0, 0, 1, 1], [], []>} : vector<8x32xf32>, vector<32x32xf32>, vector<8x32xf32> -> vector<8x32xf32>
    %78 = vector.extract_strided_slice %65 {offsets = [0, 64], sizes = [8, 32], strides = [1, 1]} : vector<8x128xf32> to vector<8x32xf32>
    %79 = arith.addf %77, %78 : vector<8x32xf32>
    %80 = math.tanh %79 : vector<8x32xf32>
    %cst_31 = arith.constant 1.000000e+00 : f32
    %81 = vector.broadcast %cst_31 : f32 to vector<8x32xf32>
    %82 = arith.subf %81, %74 : vector<8x32xf32>
    %83 = arith.mulf %82, %59 : vector<8x32xf32>
    %84 = arith.mulf %74, %80 : vector<8x32xf32>
    %85 = arith.addf %83, %84 : vector<8x32xf32>
    %86 = arith.index_cast %63 : i32 to index
    %c0_32 = arith.constant 0 : index
    %87 = vector.load %arg10[%86, %c0_32] : memref<64x32xf32, #tpu.memory_space<vmem>>, vector<8x32xf32>
    tpu.vector_store %arg10[%86, %c0_32], %85 {strides = array<i32>} : memref<64x32xf32, #tpu.memory_space<vmem>>, vector<8x32xf32>,
    %c3_i32 = arith.constant 3 : i32
    %c8_i32_33 = arith.constant 8 : i32
    %88 = arith.muli %c3_i32, %c8_i32_33 : i32
    %89 = tpu.assume_multiple %88, 8 : i32
    %90 = arith.index_cast %89 : i32 to index
    %c0_34 = arith.constant 0 : index
    %91 = vector.load %arg9[%90, %c0_34] : memref<64x128xf32, #tpu.memory_space<vmem>>, vector<8x128xf32>
    %cst_35 = arith.constant dense<0.000000e+00> : vector<8x64xf32>
    %92 = tpu.matmul %85, %7, %cst_35 {dimension_numbers = #tpu.dot_dimension_numbers<[1], [0], [0], [1], [0, 0, 1, 1], [], []>} : vector<8x32xf32>, vector<32x64xf32>, vector<8x64xf32> -> vector<8x64xf32>
    %93 = vector.extract_strided_slice %91 {offsets = [0, 0], sizes = [8, 64], strides = [1, 1]} : vector<8x128xf32> to vector<8x64xf32>
    %94 = arith.addf %92, %93 : vector<8x64xf32>
    %95 = arith.negf %94 : vector<8x64xf32>
    %96 = math.exp %95 : vector<8x64xf32>
    %cst_36 = arith.constant 1.000000e+00 : f32
    %97 = vector.broadcast %cst_36 : f32 to vector<8x64xf32>
    %98 = arith.addf %97, %96 : vector<8x64xf32>
    %99 = arith.divf %97, %98 : vector<8x64xf32>
    %100 = vector.extract_strided_slice %99 {offsets = [0, 0], sizes = [8, 32], strides = [1, 1]} : vector<8x64xf32> to vector<8x32xf32>
    %101 = vector.extract_strided_slice %99 {offsets = [0, 32], sizes = [8, 32], strides = [1, 1]} : vector<8x64xf32> to vector<8x32xf32>
    %102 = arith.mulf %101, %85 : vector<8x32xf32>
    %cst_37 = arith.constant dense<0.000000e+00> : vector<8x32xf32>
    %103 = tpu.matmul %102, %8, %cst_37 {dimension_numbers = #tpu.dot_dimension_numbers<[1], [0], [0], [1], [0, 0, 1, 1], [], []>} : vector<8x32xf32>, vector<32x32xf32>, vector<8x32xf32> -> vector<8x32xf32>
    %104 = vector.extract_strided_slice %91 {offsets = [0, 64], sizes = [8, 32], strides = [1, 1]} : vector<8x128xf32> to vector<8x32xf32>
    %105 = arith.addf %103, %104 : vector<8x32xf32>
    %106 = math.tanh %105 : vector<8x32xf32>
    %cst_38 = arith.constant 1.000000e+00 : f32
    %107 = vector.broadcast %cst_38 : f32 to vector<8x32xf32>
    %108 = arith.subf %107, %100 : vector<8x32xf32>
    %109 = arith.mulf %108, %85 : vector<8x32xf32>
    %110 = arith.mulf %100, %106 : vector<8x32xf32>
    %111 = arith.addf %109, %110 : vector<8x32xf32>
    %112 = arith.index_cast %89 : i32 to index
    %c0_39 = arith.constant 0 : index
    %113 = vector.load %arg10[%112, %c0_39] : memref<64x32xf32, #tpu.memory_space<vmem>>, vector<8x32xf32>
    tpu.vector_store %arg10[%112, %c0_39], %111 {strides = array<i32>} : memref<64x32xf32, #tpu.memory_space<vmem>>, vector<8x32xf32>,
    %c4_i32 = arith.constant 4 : i32
    %c8_i32_40 = arith.constant 8 : i32
    %114 = arith.muli %c4_i32, %c8_i32_40 : i32
    %115 = tpu.assume_multiple %114, 8 : i32
    %116 = arith.index_cast %115 : i32 to index
    %c0_41 = arith.constant 0 : index
    %117 = vector.load %arg9[%116, %c0_41] : memref<64x128xf32, #tpu.memory_space<vmem>>, vector<8x128xf32>
    %cst_42 = arith.constant dense<0.000000e+00> : vector<8x64xf32>
    %118 = tpu.matmul %111, %7, %cst_42 {dimension_numbers = #tpu.dot_dimension_numbers<[1], [0], [0], [1], [0, 0, 1, 1], [], []>} : vector<8x32xf32>, vector<32x64xf32>, vector<8x64xf32> -> vector<8x64xf32>
    %119 = vector.extract_strided_slice %117 {offsets = [0, 0], sizes = [8, 64], strides = [1, 1]} : vector<8x128xf32> to vector<8x64xf32>
    %120 = arith.addf %118, %119 : vector<8x64xf32>
    %121 = arith.negf %120 : vector<8x64xf32>
    %122 = math.exp %121 : vector<8x64xf32>
    %cst_43 = arith.constant 1.000000e+00 : f32
    %123 = vector.broadcast %cst_43 : f32 to vector<8x64xf32>
    %124 = arith.addf %123, %122 : vector<8x64xf32>
    %125 = arith.divf %123, %124 : vector<8x64xf32>
    %126 = vector.extract_strided_slice %125 {offsets = [0, 0], sizes = [8, 32], strides = [1, 1]} : vector<8x64xf32> to vector<8x32xf32>
    %127 = vector.extract_strided_slice %125 {offsets = [0, 32], sizes = [8, 32], strides = [1, 1]} : vector<8x64xf32> to vector<8x32xf32>
    %128 = arith.mulf %127, %111 : vector<8x32xf32>
    %cst_44 = arith.constant dense<0.000000e+00> : vector<8x32xf32>
    %129 = tpu.matmul %128, %8, %cst_44 {dimension_numbers = #tpu.dot_dimension_numbers<[1], [0], [0], [1], [0, 0, 1, 1], [], []>} : vector<8x32xf32>, vector<32x32xf32>, vector<8x32xf32> -> vector<8x32xf32>
    %130 = vector.extract_strided_slice %117 {offsets = [0, 64], sizes = [8, 32], strides = [1, 1]} : vector<8x128xf32> to vector<8x32xf32>
    %131 = arith.addf %129, %130 : vector<8x32xf32>
    %132 = math.tanh %131 : vector<8x32xf32>
    %cst_45 = arith.constant 1.000000e+00 : f32
    %133 = vector.broadcast %cst_45 : f32 to vector<8x32xf32>
    %134 = arith.subf %133, %126 : vector<8x32xf32>
    %135 = arith.mulf %134, %111 : vector<8x32xf32>
    %136 = arith.mulf %126, %132 : vector<8x32xf32>
    %137 = arith.addf %135, %136 : vector<8x32xf32>
    %138 = arith.index_cast %115 : i32 to index
    %c0_46 = arith.constant 0 : index
    %139 = vector.load %arg10[%138, %c0_46] : memref<64x32xf32, #tpu.memory_space<vmem>>, vector<8x32xf32>
    tpu.vector_store %arg10[%138, %c0_46], %137 {strides = array<i32>} : memref<64x32xf32, #tpu.memory_space<vmem>>, vector<8x32xf32>,
    %c5_i32 = arith.constant 5 : i32
    %c8_i32_47 = arith.constant 8 : i32
    %140 = arith.muli %c5_i32, %c8_i32_47 : i32
    %141 = tpu.assume_multiple %140, 8 : i32
    %142 = arith.index_cast %141 : i32 to index
    %c0_48 = arith.constant 0 : index
    %143 = vector.load %arg9[%142, %c0_48] : memref<64x128xf32, #tpu.memory_space<vmem>>, vector<8x128xf32>
    %cst_49 = arith.constant dense<0.000000e+00> : vector<8x64xf32>
    %144 = tpu.matmul %137, %7, %cst_49 {dimension_numbers = #tpu.dot_dimension_numbers<[1], [0], [0], [1], [0, 0, 1, 1], [], []>} : vector<8x32xf32>, vector<32x64xf32>, vector<8x64xf32> -> vector<8x64xf32>
    %145 = vector.extract_strided_slice %143 {offsets = [0, 0], sizes = [8, 64], strides = [1, 1]} : vector<8x128xf32> to vector<8x64xf32>
    %146 = arith.addf %144, %145 : vector<8x64xf32>
    %147 = arith.negf %146 : vector<8x64xf32>
    %148 = math.exp %147 : vector<8x64xf32>
    %cst_50 = arith.constant 1.000000e+00 : f32
    %149 = vector.broadcast %cst_50 : f32 to vector<8x64xf32>
    %150 = arith.addf %149, %148 : vector<8x64xf32>
    %151 = arith.divf %149, %150 : vector<8x64xf32>
    %152 = vector.extract_strided_slice %151 {offsets = [0, 0], sizes = [8, 32], strides = [1, 1]} : vector<8x64xf32> to vector<8x32xf32>
    %153 = vector.extract_strided_slice %151 {offsets = [0, 32], sizes = [8, 32], strides = [1, 1]} : vector<8x64xf32> to vector<8x32xf32>
    %154 = arith.mulf %153, %137 : vector<8x32xf32>
    %cst_51 = arith.constant dense<0.000000e+00> : vector<8x32xf32>
    %155 = tpu.matmul %154, %8, %cst_51 {dimension_numbers = #tpu.dot_dimension_numbers<[1], [0], [0], [1], [0, 0, 1, 1], [], []>} : vector<8x32xf32>, vector<32x32xf32>, vector<8x32xf32> -> vector<8x32xf32>
    %156 = vector.extract_strided_slice %143 {offsets = [0, 64], sizes = [8, 32], strides = [1, 1]} : vector<8x128xf32> to vector<8x32xf32>
    %157 = arith.addf %155, %156 : vector<8x32xf32>
    %158 = math.tanh %157 : vector<8x32xf32>
    %cst_52 = arith.constant 1.000000e+00 : f32
    %159 = vector.broadcast %cst_52 : f32 to vector<8x32xf32>
    %160 = arith.subf %159, %152 : vector<8x32xf32>
    %161 = arith.mulf %160, %137 : vector<8x32xf32>
    %162 = arith.mulf %152, %158 : vector<8x32xf32>
    %163 = arith.addf %161, %162 : vector<8x32xf32>
    %164 = arith.index_cast %141 : i32 to index
    %c0_53 = arith.constant 0 : index
    %165 = vector.load %arg10[%164, %c0_53] : memref<64x32xf32, #tpu.memory_space<vmem>>, vector<8x32xf32>
    tpu.vector_store %arg10[%164, %c0_53], %163 {strides = array<i32>} : memref<64x32xf32, #tpu.memory_space<vmem>>, vector<8x32xf32>,
    %c6_i32 = arith.constant 6 : i32
    %c8_i32_54 = arith.constant 8 : i32
    %166 = arith.muli %c6_i32, %c8_i32_54 : i32
    %167 = tpu.assume_multiple %166, 8 : i32
    %168 = arith.index_cast %167 : i32 to index
    %c0_55 = arith.constant 0 : index
    %169 = vector.load %arg9[%168, %c0_55] : memref<64x128xf32, #tpu.memory_space<vmem>>, vector<8x128xf32>
    %cst_56 = arith.constant dense<0.000000e+00> : vector<8x64xf32>
    %170 = tpu.matmul %163, %7, %cst_56 {dimension_numbers = #tpu.dot_dimension_numbers<[1], [0], [0], [1], [0, 0, 1, 1], [], []>} : vector<8x32xf32>, vector<32x64xf32>, vector<8x64xf32> -> vector<8x64xf32>
    %171 = vector.extract_strided_slice %169 {offsets = [0, 0], sizes = [8, 64], strides = [1, 1]} : vector<8x128xf32> to vector<8x64xf32>
    %172 = arith.addf %170, %171 : vector<8x64xf32>
    %173 = arith.negf %172 : vector<8x64xf32>
    %174 = math.exp %173 : vector<8x64xf32>
    %cst_57 = arith.constant 1.000000e+00 : f32
    %175 = vector.broadcast %cst_57 : f32 to vector<8x64xf32>
    %176 = arith.addf %175, %174 : vector<8x64xf32>
    %177 = arith.divf %175, %176 : vector<8x64xf32>
    %178 = vector.extract_strided_slice %177 {offsets = [0, 0], sizes = [8, 32], strides = [1, 1]} : vector<8x64xf32> to vector<8x32xf32>
    %179 = vector.extract_strided_slice %177 {offsets = [0, 32], sizes = [8, 32], strides = [1, 1]} : vector<8x64xf32> to vector<8x32xf32>
    %180 = arith.mulf %179, %163 : vector<8x32xf32>
    %cst_58 = arith.constant dense<0.000000e+00> : vector<8x32xf32>
    %181 = tpu.matmul %180, %8, %cst_58 {dimension_numbers = #tpu.dot_dimension_numbers<[1], [0], [0], [1], [0, 0, 1, 1], [], []>} : vector<8x32xf32>, vector<32x32xf32>, vector<8x32xf32> -> vector<8x32xf32>
    %182 = vector.extract_strided_slice %169 {offsets = [0, 64], sizes = [8, 32], strides = [1, 1]} : vector<8x128xf32> to vector<8x32xf32>
    %183 = arith.addf %181, %182 : vector<8x32xf32>
    %184 = math.tanh %183 : vector<8x32xf32>
    %cst_59 = arith.constant 1.000000e+00 : f32
    %185 = vector.broadcast %cst_59 : f32 to vector<8x32xf32>
    %186 = arith.subf %185, %178 : vector<8x32xf32>
    %187 = arith.mulf %186, %163 : vector<8x32xf32>
    %188 = arith.mulf %178, %184 : vector<8x32xf32>
    %189 = arith.addf %187, %188 : vector<8x32xf32>
    %190 = arith.index_cast %167 : i32 to index
    %c0_60 = arith.constant 0 : index
    %191 = vector.load %arg10[%190, %c0_60] : memref<64x32xf32, #tpu.memory_space<vmem>>, vector<8x32xf32>
    tpu.vector_store %arg10[%190, %c0_60], %189 {strides = array<i32>} : memref<64x32xf32, #tpu.memory_space<vmem>>, vector<8x32xf32>,
    %c7_i32 = arith.constant 7 : i32
    %c8_i32_61 = arith.constant 8 : i32
    %192 = arith.muli %c7_i32, %c8_i32_61 : i32
    %193 = tpu.assume_multiple %192, 8 : i32
    %194 = arith.index_cast %193 : i32 to index
    %c0_62 = arith.constant 0 : index
    %195 = vector.load %arg9[%194, %c0_62] : memref<64x128xf32, #tpu.memory_space<vmem>>, vector<8x128xf32>
    %cst_63 = arith.constant dense<0.000000e+00> : vector<8x64xf32>
    %196 = tpu.matmul %189, %7, %cst_63 {dimension_numbers = #tpu.dot_dimension_numbers<[1], [0], [0], [1], [0, 0, 1, 1], [], []>} : vector<8x32xf32>, vector<32x64xf32>, vector<8x64xf32> -> vector<8x64xf32>
    %197 = vector.extract_strided_slice %195 {offsets = [0, 0], sizes = [8, 64], strides = [1, 1]} : vector<8x128xf32> to vector<8x64xf32>
    %198 = arith.addf %196, %197 : vector<8x64xf32>
    %199 = arith.negf %198 : vector<8x64xf32>
    %200 = math.exp %199 : vector<8x64xf32>
    %cst_64 = arith.constant 1.000000e+00 : f32
    %201 = vector.broadcast %cst_64 : f32 to vector<8x64xf32>
    %202 = arith.addf %201, %200 : vector<8x64xf32>
    %203 = arith.divf %201, %202 : vector<8x64xf32>
    %204 = vector.extract_strided_slice %203 {offsets = [0, 0], sizes = [8, 32], strides = [1, 1]} : vector<8x64xf32> to vector<8x32xf32>
    %205 = vector.extract_strided_slice %203 {offsets = [0, 32], sizes = [8, 32], strides = [1, 1]} : vector<8x64xf32> to vector<8x32xf32>
    %206 = arith.mulf %205, %189 : vector<8x32xf32>
    %cst_65 = arith.constant dense<0.000000e+00> : vector<8x32xf32>
    %207 = tpu.matmul %206, %8, %cst_65 {dimension_numbers = #tpu.dot_dimension_numbers<[1], [0], [0], [1], [0, 0, 1, 1], [], []>} : vector<8x32xf32>, vector<32x32xf32>, vector<8x32xf32> -> vector<8x32xf32>
    %208 = vector.extract_strided_slice %195 {offsets = [0, 64], sizes = [8, 32], strides = [1, 1]} : vector<8x128xf32> to vector<8x32xf32>
    %209 = arith.addf %207, %208 : vector<8x32xf32>
    %210 = math.tanh %209 : vector<8x32xf32>
    %cst_66 = arith.constant 1.000000e+00 : f32
    %211 = vector.broadcast %cst_66 : f32 to vector<8x32xf32>
    %212 = arith.subf %211, %204 : vector<8x32xf32>
    %213 = arith.mulf %212, %189 : vector<8x32xf32>
    %214 = arith.mulf %204, %210 : vector<8x32xf32>
    %215 = arith.addf %213, %214 : vector<8x32xf32>
    %216 = arith.index_cast %193 : i32 to index
    %c0_67 = arith.constant 0 : index
    %217 = vector.load %arg10[%216, %c0_67] : memref<64x32xf32, #tpu.memory_space<vmem>>, vector<8x32xf32>
    tpu.vector_store %arg10[%216, %c0_67], %215 {strides = array<i32>} : memref<64x32xf32, #tpu.memory_space<vmem>>, vector<8x32xf32>,
    %c8_i32_68 = arith.constant 8 : i32
    %c0_69 = arith.constant 0 : index
    %c0_70 = arith.constant 0 : index
    %218 = vector.load %arg10[%c0_69, %c0_70] : memref<64x32xf32, #tpu.memory_space<vmem>>, vector<64x32xf32>
    %c0_71 = arith.constant 0 : index
    %c0_72 = arith.constant 0 : index
    %219 = vector.load %arg6[%c0_71, %c0_72] : memref<32x128xf32, #tpu.memory_space<vmem>>, vector<32x128xf32>
    %cst_73 = arith.constant dense<0.000000e+00> : vector<64x128xf32>
    %220 = tpu.matmul %218, %219, %cst_73 {dimension_numbers = #tpu.dot_dimension_numbers<[1], [0], [0], [1], [0, 0, 1, 1], [], []>} : vector<64x32xf32>, vector<32x128xf32>, vector<64x128xf32> -> vector<64x128xf32>
    %c0_74 = arith.constant 0 : index
    %c0_75 = arith.constant 0 : index
    %221 = vector.load %arg7[%c0_74, %c0_75] : memref<1x128xf32, #tpu.memory_space<vmem>>, vector<1x128xf32>
    %222 = vector.broadcast %221 : vector<1x128xf32> to vector<64x128xf32>
    %223 = arith.addf %220, %222 : vector<64x128xf32>
    %c0_76 = arith.constant 0 : index
    %c0_77 = arith.constant 0 : index
    %224 = vector.load %arg8[%c0_76, %c0_77] : memref<64x128xf32, #tpu.memory_space<vmem>>, vector<64x128xf32>
    tpu.vector_store %arg8[%c0_76, %c0_77], %223 {strides = array<i32>} : memref<64x128xf32, #tpu.memory_space<vmem>>, vector<64x128xf32>,
    return
  }
}

</mosaic_0001>

<llo_original>
// kernel: tpu_custom_call.1
$region0: #{tpu_custom_call.1}
  #allocation0 [shape = 'u32[]', space=smem, size = 0x4, offset = 0x4, fixed_abs, tag = 'smem constant byte address 0x4 - core index']
  #allocation1 [shape = 'u32[144,128]{1,0:T(1,128)}', space=vmem, size = 0x12000, scoped, tag = 'internal scratch']
  #allocation2 [shape = 'f32[64,128]{1,0:T(8,128)}', space=vmem, size = 0x8000, scoped, tag = 'scratch operand']
  #allocation3 [shape = 'f32[64,32]{1,0:T(8,128)}', space=vmem, size = 0x8000, scoped, tag = 'scratch operand']
  %s0 = inlined_call_operand.vmem [shape: f32[64,16], index: 0, kind: input, shape index: {}]
  %s1 = inlined_call_operand.hbm [shape: f32[8,32], index: 1, kind: input, shape index: {}]
  %s2 = inlined_call_operand.hbm [shape: f32[16,128], index: 2, kind: input, shape index: {}]
  %s3 = inlined_call_operand.vmem [shape: f32[1,128], index: 3, kind: input, shape index: {}]
  %s4 = inlined_call_operand.vmem [shape: f32[32,64], index: 4, kind: input, shape index: {}]
  %s5 = inlined_call_operand.vmem [shape: f32[32,32], index: 5, kind: input, shape index: {}]
  %s6 = inlined_call_operand.vmem [shape: f32[32,128], index: 6, kind: input, shape index: {}]
  %s7 = inlined_call_operand.vmem [shape: f32[1,128], index: 7, kind: input, shape index: {}]
  %s8 = inlined_call_operand.hbm [shape: f32[64,128], index: 8, kind: output, shape index: {}]
  %s9 = sld [smem:[#allocation0]]
  $region50: #{tpu_custom_call.1} parent=0
    _
  %s11 = ssub.s32 1, %s9
  %s12 = scalar_select 0, %s11, %s9
  $region1: #{tpu_custom_call.1} parent=0
    #allocation4 [shape = 'u8[4096]{0}', space=vmem, size = 0x1000, scoped, tag = 'input window, operand 1, single buffered']
    #allocation5 [shape = 's32[1]{0}', space=sflag, size = 0x4, scoped, tag = 'scoped memory for tpu_custom_call.1']
    #allocation6 [shape = 's32[1]{0}', space=sflag, size = 0x4, scoped, tag = 'scoped memory for tpu_custom_call.1']
    #allocation7 [shape = 'u8[8192]{0}', space=vmem, size = 0x2000, scoped, tag = 'input window, operand 2, single buffered']
    #allocation8 [shape = 's32[1]{0}', space=sflag, size = 0x4, scoped, tag = 'scoped memory for tpu_custom_call.1']
    #allocation9 [shape = 'u8[32768]{0}', space=vmem, size = 0x8000, scoped, tag = 'output window, operand 0, single buffered']
    %13 = vsyncpa [#allocation5], 0
    %14 = vsyncpa [#allocation8], 0
    %15 = vsyncpa [#allocation6], 0
    // Predicated region
    $region2: #{tpu_custom_call.1} parent=1 // pred_check
      _
    $region3: #{tpu_custom_call.1} parent=1 // pred_check_branch
      %17 = sbr.rel (0) target = $region5
    $region4: #{tpu_custom_call.1} parent=1 // pred_region
      _
    $region5: #{tpu_custom_call.1} parent=1 // pred_fallthru
      _
    // Predicated region
    $region6: #{tpu_custom_call.1} parent=1 // pred_check
      _
    $region7: #{tpu_custom_call.1} parent=1 // pred_check_branch
      %19 = sbr.rel (0) target = $region9
    $region8: #{tpu_custom_call.1} parent=1 // pred_region
      %s21 = ssub.s32 128, 128
      %22 = vsyncadd [#allocation5], %s21
      %s24 = sshll.u32 [#allocation4], 4
      %s25 = int_to_ptr.vmem [resolvable:$true] %s24
      %27 = dma.hbm_to_vmem [thread:$0]  %s1, 128, %s25, [#allocation5]
    $region9: #{tpu_custom_call.1} parent=1 // pred_fallthru
      _
    // Predicated region
    $region10: #{tpu_custom_call.1} parent=1 // pred_check
      _
    $region11: #{tpu_custom_call.1} parent=1 // pred_check_branch
      %29 = sbr.rel (0) target = $region13
    $region12: #{tpu_custom_call.1} parent=1 // pred_region
      %s31 = ssub.s32 256, 256
      %32 = vsyncadd [#allocation8], %s31
      %s33 = sshll.u32 [#allocation7], 4
      %s34 = int_to_ptr.vmem [resolvable:$true] %s33
      %39 = dma.hbm_to_vmem [thread:$0]  %s2, 256, %s34, [#allocation8], 128, 128, 8
    $region13: #{tpu_custom_call.1} parent=1 // pred_fallthru
      _
    // Predicated region
    $region14: #{tpu_custom_call.1} parent=1 // pred_check
      _
    $region15: #{tpu_custom_call.1} parent=1 // pred_check_branch
      %41 = sbr.rel (0) target = $region17
    $region16: #{tpu_custom_call.1} parent=1 // pred_region
      _
    $region17: #{tpu_custom_call.1} parent=1 // pred_fallthru
      _
    // Predicated region
    $region18: #{tpu_custom_call.1} parent=1 // pred_check
      _
    $region19: #{tpu_custom_call.1} parent=1 // pred_check_branch
      %43 = sbr.rel (0) target = $region21
    $region20: #{tpu_custom_call.1} parent=1 // pred_region
      _
    $region21: #{tpu_custom_call.1} parent=1 // pred_fallthru
      _
    // Predicated region
    $region22: #{tpu_custom_call.1} parent=1 // pred_check
      _
    $region23: #{tpu_custom_call.1} parent=1 // pred_check_branch
      %45 = sbr.rel (0) target = $region25
    $region24: #{tpu_custom_call.1} parent=1 // pred_region
      _
    $region25: #{tpu_custom_call.1} parent=1 // pred_fallthru
      _
    // Predicated region
    $region26: #{tpu_custom_call.1} parent=1 // pred_check
      _
    $region27: #{tpu_custom_call.1} parent=1 // pred_check_branch
      %47 = sbr.rel (0) target = $region29
    $region28: #{tpu_custom_call.1} parent=1 // pred_region
      _
    $region29: #{tpu_custom_call.1} parent=1 // pred_fallthru
      _
    // Predicated region
    $region30: #{tpu_custom_call.1} parent=1 // pred_check
      _
    $region31: #{tpu_custom_call.1} parent=1 // pred_check_branch
      %49 = sbr.rel (0) target = $region33
    $region32: #{tpu_custom_call.1} parent=1 // pred_region
      _
    $region33: #{tpu_custom_call.1} parent=1 // pred_fallthru
      _
    // Predicated region
    $region34: #{tpu_custom_call.1} parent=1 // pred_check
      _
    $region35: #{tpu_custom_call.1} parent=1 // pred_check_branch
      %51 = sbr.rel (0) target = $region37
    $region36: #{tpu_custom_call.1} parent=1 // pred_region
      %52 = dma.done [#allocation5], 128
    $region37: #{tpu_custom_call.1} parent=1 // pred_fallthru
      _
    // Predicated region
    $region38: #{tpu_custom_call.1} parent=1 // pred_check
      _
    $region39: #{tpu_custom_call.1} parent=1 // pred_check_branch
      %54 = sbr.rel (0) target = $region41
    $region40: #{tpu_custom_call.1} parent=1 // pred_region
      %55 = dma.done [#allocation8], 256
    $region41: #{tpu_custom_call.1} parent=1 // pred_fallthru
      _
    %v56 = vld [vmem:[%s0] sm:$0xff]
    %v57 = vld [vmem:[%s0 + $0x8] sm:$0xff]
    %v58 = vld [vmem:[%s0 + $0x10] sm:$0xff]
    %v59 = vld [vmem:[%s0 + $0x18] sm:$0xff]
    %v60 = vld [vmem:[%s0 + $0x20] sm:$0xff]
    %v61 = vld [vmem:[%s0 + $0x28] sm:$0xff]
    %v62 = vld [vmem:[%s0 + $0x30] sm:$0xff]
    %v63 = vld [vmem:[%s0 + $0x38] sm:$0xff]
    %v64 = vld [vmem:[#allocation7] sm:$0xff]
    %v65 = vld [vmem:[#allocation7 + $0x8] sm:$0xff]
    %v66 = vld [vmem:[%s3] sm:$0x1]
    %v68 = vlaneseq
    %v69 = vshrl.u32 %v68, 7
    %v70 = vsub.s32 0, %v69
    %v71 = vrot.slane %v66, %v70
    %vm73 = vcmask 130048
    %v75 = vsel %vm73, %v56, 0
    %v78 = vsel %vm73, %v57, 0
    %v81 = vsel %vm73, %v58, 0
    %v84 = vsel %vm73, %v59, 0
    %v87 = vsel %vm73, %v60, 0
    %v90 = vsel %vm73, %v61, 0
    %v93 = vsel %vm73, %v62, 0
    %v96 = vsel %vm73, %v63, 0
    %98 = vmatprep.subr.mxu0 0.0
    %99 = vmatpush1.msra.mxu0 %v64
    %100 = vmatprep.subr.mxu0 0.0
    %101 = vmatpush1.msra.mxu0 %v65
    %102 = vmatprep.subr.mxu0 0.0
    %103 = vmatpush1.msra.mxu0 0.0
    %104 = vmatprep.subr.mxu0 0.0
    %105 = vmatpush1.msra.mxu0 0.0
    %106 = vmatprep.subr.mxu0 0.0
    %107 = vmatpush1.msra.mxu0 0.0
    %108 = vmatprep.subr.mxu0 0.0
    %109 = vmatpush1.msra.mxu0 0.0
    %110 = vmatprep.subr.mxu0 0.0
    %111 = vmatpush1.msra.mxu0 0.0
    %112 = vmatprep.subr.mxu0 0.0
    %113 = vmatpush1.msra.mxu0 0.0
    %114 = vmatprep.subr.mxu0 0.0
    %115 = vmatpush1.msra.mxu0 0.0
    %116 = vmatprep.subr.mxu0 0.0
    %117 = vmatpush1.msra.mxu0 0.0
    %118 = vmatprep.subr.mxu0 0.0
    %119 = vmatpush1.msra.mxu0 0.0
    %120 = vmatprep.subr.mxu0 0.0
    %121 = vmatpush1.msra.mxu0 0.0
    %122 = vmatprep.subr.mxu0 0.0
    %123 = vmatpush1.msra.mxu0 0.0
    %124 = vmatprep.subr.mxu0 0.0
    %125 = vmatpush1.msra.mxu0 0.0
    %126 = vmatprep.subr.mxu0 0.0
    %127 = vmatpush1.msra.mxu0 0.0
    %128 = vmatprep.subr.mxu0 0.0
    %129 = vmatpush1.msra.mxu0 0.0
    %130 = vmatprep.subr.mxu0 0.0
    %131 = vmatpush1.msra.mxu0 0.0
    %132 = vmatprep.subr.mxu0 0.0
    %133 = vmatpush1.msra.mxu0 0.0
    %134 = vmatprep.subr.mxu0 0.0
    %135 = vmatpush1.msra.mxu0 0.0
    %136 = vmatprep.subr.mxu0 0.0
    %137 = vmatpush1.msra.mxu0 0.0
    %138 = vmatprep.subr.mxu0 0.0
    %139 = vmatpush1.msra.mxu0 0.0
    %140 = vmatprep.subr.mxu0 0.0
    %141 = vmatpush1.msra.mxu0 0.0
    %142 = vmatprep.subr.mxu0 0.0
    %143 = vmatpush1.msra.mxu0 0.0
    %144 = vmatprep.subr.mxu0 0.0
    %145 = vmatpush1.msra.mxu0 0.0
    %146 = vmatprep.subr.mxu0 0.0
    %147 = vmatpush1.msra.mxu0 0.0
    %148 = vmatprep.subr.mxu0 0.0
    %149 = vmatpush1.msra.mxu0 0.0
    %150 = vmatprep.subr.mxu0 0.0
    %151 = vmatpush1.msra.mxu0 0.0
    %152 = vmatprep.subr.mxu0 0.0
    %153 = vmatpush1.msra.mxu0 0.0
    %154 = vmatprep.subr.mxu0 0.0
    %155 = vmatpush1.msra.mxu0 0.0
    %156 = vmatprep.subr.mxu0 0.0
    %157 = vmatpush1.msra.mxu0 0.0
    %158 = vmatprep.subr.mxu0 0.0
    %159 = vmatpush1.msra.mxu0 0.0
    %160 = vmatprep.subr.mxu0 0.0
    %161 = vmatpush1.msra.mxu0 0.0
    %162 = vmatprep.mubr.f32.mxu0 0.0
    %163 = vmatmul.mubr.f32.gmra.mrb[0].mxu0 %v75
    %v164 = vpop.f32.mrb[0].mxu0
    %v165 = vadd.f32 %v71, %v164
    %v166 = vpop.f32.mrb[0].mxu0
    %167 = vmatprep.mubr.f32.mxu0 0.0
    %168 = vmatmul.mubr.f32.gmra.mrb[0].mxu0 %v78
    %v169 = vpop.f32.mrb[0].mxu0
    %v170 = vadd.f32 %v71, %v169
    %v171 = vpop.f32.mrb[0].mxu0
    %172 = vmatprep.mubr.f32.mxu0 0.0
    %173 = vmatmul.mubr.f32.gmra.mrb[0].mxu0 %v81
    %v174 = vpop.f32.mrb[0].mxu0
    %v175 = vadd.f32 %v71, %v174
    %v176 = vpop.f32.mrb[0].mxu0
    %177 = vmatprep.mubr.f32.mxu0 0.0
    %178 = vmatmul.mubr.f32.gmra.mrb[0].mxu0 %v84
    %v179 = vpop.f32.mrb[0].mxu0
    %v180 = vadd.f32 %v71, %v179
    %v181 = vpop.f32.mrb[0].mxu0
    %182 = vmatprep.mubr.f32.mxu0 0.0
    %183 = vmatmul.mubr.f32.gmra.mrb[0].mxu0 %v87
    %v184 = vpop.f32.mrb[0].mxu0
    %v185 = vadd.f32 %v71, %v184
    %v186 = vpop.f32.mrb[0].mxu0
    %187 = vmatprep.mubr.f32.mxu0 0.0
    %188 = vmatmul.mubr.f32.gmra.mrb[0].mxu0 %v90
    %v189 = vpop.f32.mrb[0].mxu0
    %v190 = vadd.f32 %v71, %v189
    %v191 = vpop.f32.mrb[0].mxu0
    %192 = vmatprep.mubr.f32.mxu0 0.0
    %193 = vmatmul.mubr.f32.gmra.mrb[0].mxu0 %v93
    %v194 = vpop.f32.mrb[0].mxu0
    %v195 = vadd.f32 %v71, %v194
    %v196 = vpop.f32.mrb[0].mxu0
    %197 = vmatprep.mubr.f32.mxu0 0.0
    %198 = vmatmul.mubr.f32.gmra.mrb[0].mxu0 %v96
    %v199 = vpop.f32.mrb[0].mxu0
    %v200 = vadd.f32 %v71, %v199
    %v201 = vpop.f32.mrb[0].mxu0
    %202 = vdwg.mxu0
    %203 = vst [vmem:[#allocation2] sm:$0xff] %v165
    %204 = vst [vmem:[#allocation2 + $0x8] sm:$0xff] %v170
    %205 = vst [vmem:[#allocation2 + $0x10] sm:$0xff] %v175
    %206 = vst [vmem:[#allocation2 + $0x18] sm:$0xff] %v180
    %207 = vst [vmem:[#allocation2 + $0x20] sm:$0xff] %v185
    %208 = vst [vmem:[#allocation2 + $0x28] sm:$0xff] %v190
    %209 = vst [vmem:[#allocation2 + $0x30] sm:$0xff] %v195
    %210 = vst [vmem:[#allocation2 + $0x38] sm:$0xff] %v200
    %v211 = vld [vmem:[%s4] sm:$0xff]
    %v212 = vld [vmem:[%s4 + $0x8] sm:$0xff]
    %v213 = vld [vmem:[%s4 + $0x10] sm:$0xff]
    %v214 = vld [vmem:[%s4 + $0x18] sm:$0xff]
    %v215 = vld [vmem:[%s5] sm:$0xff]
    %v216 = vld [vmem:[%s5 + $0x8] sm:$0xff]
    %v217 = vld [vmem:[%s5 + $0x10] sm:$0xff]
    %v218 = vld [vmem:[%s5 + $0x18] sm:$0xff]
    %v219 = vld [vmem:[#allocation4] sm:$0xff]
    %v220 = vld [vmem:[#allocation2] sm:$0xff]
    %vm221 = vcmask 261120
    %v223 = vsel %vm221, %v219, 0
    %225 = vmatprep.subr.mxu0 0.0
    %226 = vmatpush1.msra.mxu0 %v211
    %227 = vmatprep.subr.mxu0 0.0
    %228 = vmatpush1.msra.mxu0 %v212
    %229 = vmatprep.subr.mxu0 0.0
    %230 = vmatpush1.msra.mxu0 %v213
    %231 = vmatprep.subr.mxu0 0.0
    %232 = vmatpush1.msra.mxu0 %v214
    %233 = vmatprep.subr.mxu0 0.0
    %234 = vmatpush1.msra.mxu0 0.0
    %235 = vmatprep.subr.mxu0 0.0
    %236 = vmatpush1.msra.mxu0 0.0
    %237 = vmatprep.subr.mxu0 0.0
    %238 = vmatpush1.msra.mxu0 0.0
    %239 = vmatprep.subr.mxu0 0.0
    %240 = vmatpush1.msra.mxu0 0.0
    %241 = vmatprep.subr.mxu0 0.0
    %242 = vmatpush1.msra.mxu0 0.0
    %243 = vmatprep.subr.mxu0 0.0
    %244 = vmatpush1.msra.mxu0 0.0
    %245 = vmatprep.subr.mxu0 0.0
    %246 = vmatpush1.msra.mxu0 0.0
    %247 = vmatprep.subr.mxu0 0.0
    %248 = vmatpush1.msra.mxu0 0.0
    %249 = vmatprep.subr.mxu0 0.0
    %250 = vmatpush1.msra.mxu0 0.0
    %251 = vmatprep.subr.mxu0 0.0
    %252 = vmatpush1.msra.mxu0 0.0
    %253 = vmatprep.subr.mxu0 0.0
    %254 = vmatpush1.msra.mxu0 0.0
    %255 = vmatprep.subr.mxu0 0.0
    %256 = vmatpush1.msra.mxu0 0.0
    %257 = vmatprep.subr.mxu0 0.0
    %258 = vmatpush1.msra.mxu0 0.0
    %259 = vmatprep.subr.mxu0 0.0
    %260 = vmatpush1.msra.mxu0 0.0
    %261 = vmatprep.subr.mxu0 0.0
    %262 = vmatpush1.msra.mxu0 0.0
    %263 = vmatprep.subr.mxu0 0.0
    %264 = vmatpush1.msra.mxu0 0.0
    %265 = vmatprep.subr.mxu0 0.0
    %266 = vmatpush1.msra.mxu0 0.0
    %267 = vmatprep.subr.mxu0 0.0
    %268 = vmatpush1.msra.mxu0 0.0
    %269 = vmatprep.subr.mxu0 0.0
    %270 = vmatpush1.msra.mxu0 0.0
    %271 = vmatprep.subr.mxu0 0.0
    %272 = vmatpush1.msra.mxu0 0.0
    %273 = vmatprep.subr.mxu0 0.0
    %274 = vmatpush1.msra.mxu0 0.0
    %275 = vmatprep.subr.mxu0 0.0
    %276 = vmatpush1.msra.mxu0 0.0
    %277 = vmatprep.subr.mxu0 0.0
    %278 = vmatpush1.msra.mxu0 0.0
    %279 = vmatprep.subr.mxu0 0.0
    %280 = vmatpush1.msra.mxu0 0.0
    %281 = vmatprep.subr.mxu0 0.0
    %282 = vmatpush1.msra.mxu0 0.0
    %283 = vmatprep.subr.mxu0 0.0
    %284 = vmatpush1.msra.mxu0 0.0
    %285 = vmatprep.subr.mxu0 0.0
    %286 = vmatpush1.msra.mxu0 0.0
    %287 = vmatprep.subr.mxu0 0.0
    %288 = vmatpush1.msra.mxu0 0.0
    %289 = vmatprep.mubr.f32.mxu0 0.0
    %290 = vmatmul.mubr.f32.gmra.mrb[0].mxu0 %v223
    %v291 = vpop.f32.mrb[0].mxu0
    %v292 = vadd.f32 %v220, %v291
    %v293 = vpop.f32.mrb[0].mxu0
    %294 = vdwg.mxu0
    %v295 = vxor.u32 %v292, 2147483648
    %v296 = vmul.f32 %v295, 1.442695
    %v297 = vpow.pop %v296
    %v298 = vadd.f32 %v297, 1.0
    %v299 = vrcp.pop %v298
    %v300 = vmul.f32 1.0, %v299
    %301 = vrot.lane.b32.xlu0 %v219, 32
    %v302 = vpop.permute.xlu0 %301
    %v304 = vmul.f32 %v300, %v302
    %306 = vrot.lane.b32.xlu0 %v304, 96
    %v307 = vpop.permute.xlu0 %306
    %309 = vrot.lane.b32.xlu0 %v220, 64
    %v310 = vpop.permute.xlu0 %309
    %v312 = vsel %vm221, %v307, 0
    %314 = vmatprep.subr.mxu0 0.0
    %315 = vmatpush1.msra.mxu0 %v215
    %316 = vmatprep.subr.mxu0 0.0
    %317 = vmatpush1.msra.mxu0 %v216
    %318 = vmatprep.subr.mxu0 0.0
    %319 = vmatpush1.msra.mxu0 %v217
    %320 = vmatprep.subr.mxu0 0.0
    %321 = vmatpush1.msra.mxu0 %v218
    %322 = vmatprep.subr.mxu0 0.0
    %323 = vmatpush1.msra.mxu0 0.0
    %324 = vmatprep.subr.mxu0 0.0
    %325 = vmatpush1.msra.mxu0 0.0
    %326 = vmatprep.subr.mxu0 0.0
    %327 = vmatpush1.msra.mxu0 0.0
    %328 = vmatprep.subr.mxu0 0.0
    %329 = vmatpush1.msra.mxu0 0.0
    %330 = vmatprep.subr.mxu0 0.0
    %331 = vmatpush1.msra.mxu0 0.0
    %332 = vmatprep.subr.mxu0 0.0
    %333 = vmatpush1.msra.mxu0 0.0
    %334 = vmatprep.subr.mxu0 0.0
    %335 = vmatpush1.msra.mxu0 0.0
    %336 = vmatprep.subr.mxu0 0.0
    %337 = vmatpush1.msra.mxu0 0.0
    %338 = vmatprep.subr.mxu0 0.0
    %339 = vmatpush1.msra.mxu0 0.0
    %340 = vmatprep.subr.mxu0 0.0
    %341 = vmatpush1.msra.mxu0 0.0
    %342 = vmatprep.subr.mxu0 0.0
    %343 = vmatpush1.msra.mxu0 0.0
    %344 = vmatprep.subr.mxu0 0.0
    %345 = vmatpush1.msra.mxu0 0.0
    %346 = vmatprep.subr.mxu0 0.0
    %347 = vmatpush1.msra.mxu0 0.0
    %348 = vmatprep.subr.mxu0 0.0
    %349 = vmatpush1.msra.mxu0 0.0
    %350 = vmatprep.subr.mxu0 0.0
    %351 = vmatpush1.msra.mxu0 0.0
    %352 = vmatprep.subr.mxu0 0.0
    %353 = vmatpush1.msra.mxu0 0.0
    %354 = vmatprep.subr.mxu0 0.0
    %355 = vmatpush1.msra.mxu0 0.0
    %356 = vmatprep.subr.mxu0 0.0
    %357 = vmatpush1.msra.mxu0 0.0
    %358 = vmatprep.subr.mxu0 0.0
    %359 = vmatpush1.msra.mxu0 0.0
    %360 = vmatprep.subr.mxu0 0.0
    %361 = vmatpush1.msra.mxu0 0.0
    %362 = vmatprep.subr.mxu0 0.0
    %363 = vmatpush1.msra.mxu0 0.0
    %364 = vmatprep.subr.mxu0 0.0
    %365 = vmatpush1.msra.mxu0 0.0
    %366 = vmatprep.subr.mxu0 0.0
    %367 = vmatpush1.msra.mxu0 0.0
    %368 = vmatprep.subr.mxu0 0.0
    %369 = vmatpush1.msra.mxu0 0.0
    %370 = vmatprep.subr.mxu0 0.0
    %371 = vmatpush1.msra.mxu0 0.0
    %372 = vmatprep.subr.mxu0 0.0
    %373 = vmatpush1.msra.mxu0 0.0
    %374 = vmatprep.subr.mxu0 0.0
    %375 = vmatpush1.msra.mxu0 0.0
    %376 = vmatprep.subr.mxu0 0.0
    %377 = vmatpush1.msra.mxu0 0.0
    %378 = vmatprep.mubr.f32.mxu0 0.0
    %379 = vmatmul.mubr.f32.gmra.mrb[0].mxu0 %v312
    %v380 = vpop.f32.mrb[0].mxu0
    %v381 = vadd.f32 %v310, %v380
    %v382 = vpop.f32.mrb[0].mxu0
    %383 = vdwg.mxu0
    %v384 = vtanh.pop %v381
    %v385 = vsub.f32 1.0, %v300
    %v386 = vmul.f32 %v385, %v219
    %v387 = vmul.f32 %v300, %v384
    %v388 = vadd.f32 %v386, %v387
    %389 = vst.msk [vmem:[#allocation3] sm:$0xff] %vm221, %v388
    %s390 = scalar_lea.vmem [#allocation2], 8
    %v391 = vld [vmem:[%s390] sm:$0xff]
    %v393 = vsel %vm221, %v388, 0
    %395 = vmatprep.subr.mxu0 0.0
    %396 = vmatpush1.msra.mxu0 %v211
    %397 = vmatprep.subr.mxu0 0.0
    %398 = vmatpush1.msra.mxu0 %v212
    %399 = vmatprep.subr.mxu0 0.0
    %400 = vmatpush1.msra.mxu0 %v213
    %401 = vmatprep.subr.mxu0 0.0
    %402 = vmatpush1.msra.mxu0 %v214
    %403 = vmatprep.subr.mxu0 0.0
    %404 = vmatpush1.msra.mxu0 0.0
    %405 = vmatprep.subr.mxu0 0.0
    %406 = vmatpush1.msra.mxu0 0.0
    %407 = vmatprep.subr.mxu0 0.0
    %408 = vmatpush1.msra.mxu0 0.0
    %409 = vmatprep.subr.mxu0 0.0
    %410 = vmatpush1.msra.mxu0 0.0
    %411 = vmatprep.subr.mxu0 0.0
    %412 = vmatpush1.msra.mxu0 0.0
    %413 = vmatprep.subr.mxu0 0.0
    %414 = vmatpush1.msra.mxu0 0.0
    %415 = vmatprep.subr.mxu0 0.0
    %416 = vmatpush1.msra.mxu0 0.0
    %417 = vmatprep.subr.mxu0 0.0
    %418 = vmatpush1.msra.mxu0 0.0
    %419 = vmatprep.subr.mxu0 0.0
    %420 = vmatpush1.msra.mxu0 0.0
    %421 = vmatprep.subr.mxu0 0.0
    %422 = vmatpush1.msra.mxu0 0.0
    %423 = vmatprep.subr.mxu0 0.0
    %424 = vmatpush1.msra.mxu0 0.0
    %425 = vmatprep.subr.mxu0 0.0
    %426 = vmatpush1.msra.mxu0 0.0
    %427 = vmatprep.subr.mxu0 0.0
    %428 = vmatpush1.msra.mxu0 0.0
    %429 = vmatprep.subr.mxu0 0.0
    %430 = vmatpush1.msra.mxu0 0.0
    %431 = vmatprep.subr.mxu0 0.0
    %432 = vmatpush1.msra.mxu0 0.0
    %433 = vmatprep.subr.mxu0 0.0
    %434 = vmatpush1.msra.mxu0 0.0
    %435 = vmatprep.subr.mxu0 0.0
    %436 = vmatpush1.msra.mxu0 0.0
    %437 = vmatprep.subr.mxu0 0.0
    %438 = vmatpush1.msra.mxu0 0.0
    %439 = vmatprep.subr.mxu0 0.0
    %440 = vmatpush1.msra.mxu0 0.0
    %441 = vmatprep.subr.mxu0 0.0
    %442 = vmatpush1.msra.mxu0 0.0
    %443 = vmatprep.subr.mxu0 0.0
    %444 = vmatpush1.msra.mxu0 0.0
    %445 = vmatprep.subr.mxu0 0.0
    %446 = vmatpush1.msra.mxu0 0.0
    %447 = vmatprep.subr.mxu0 0.0
    %448 = vmatpush1.msra.mxu0 0.0
    %449 = vmatprep.subr.mxu0 0.0
    %450 = vmatpush1.msra.mxu0 0.0
    %451 = vmatprep.subr.mxu0 0.0
    %452 = vmatpush1.msra.mxu0 0.0
    %453 = vmatprep.subr.mxu0 0.0
    %454 = vmatpush1.msra.mxu0 0.0
    %455 = vmatprep.subr.mxu0 0.0
    %456 = vmatpush1.msra.mxu0 0.0
    %457 = vmatprep.subr.mxu0 0.0
    %458 = vmatpush1.msra.mxu0 0.0
    %459 = vmatprep.mubr.f32.mxu0 0.0
    %460 = vmatmul.mubr.f32.gmra.mrb[0].mxu0 %v393
    %v461 = vpop.f32.mrb[0].mxu0
    %v462 = vadd.f32 %v391, %v461
    %v463 = vpop.f32.mrb[0].mxu0
    %464 = vdwg.mxu0
    %v465 = vxor.u32 %v462, 2147483648
    %v466 = vmul.f32 %v465, 1.442695
    %v467 = vpow.pop %v466
    %v468 = vadd.f32 %v467, 1.0
    %v469 = vrcp.pop %v468
    %v470 = vmul.f32 1.0, %v469
    %471 = vrot.lane.b32.xlu0 %v388, 32
    %v472 = vpop.permute.xlu0 %471
    %v474 = vmul.f32 %v470, %v472
    %476 = vrot.lane.b32.xlu0 %v474, 96
    %v477 = vpop.permute.xlu0 %476
    %479 = vrot.lane.b32.xlu0 %v391, 64
    %v480 = vpop.permute.xlu0 %479
    %v482 = vsel %vm221, %v477, 0
    %484 = vmatprep.subr.mxu0 0.0
    %485 = vmatpush1.msra.mxu0 %v215
    %486 = vmatprep.subr.mxu0 0.0
    %487 = vmatpush1.msra.mxu0 %v216
    %488 = vmatprep.subr.mxu0 0.0
    %489 = vmatpush1.msra.mxu0 %v217
    %490 = vmatprep.subr.mxu0 0.0
    %491 = vmatpush1.msra.mxu0 %v218
    %492 = vmatprep.subr.mxu0 0.0
    %493 = vmatpush1.msra.mxu0 0.0
    %494 = vmatprep.subr.mxu0 0.0
    %495 = vmatpush1.msra.mxu0 0.0
    %496 = vmatprep.subr.mxu0 0.0
    %497 = vmatpush1.msra.mxu0 0.0
    %498 = vmatprep.subr.mxu0 0.0
    %499 = vmatpush1.msra.mxu0 0.0
    %500 = vmatprep.subr.mxu0 0.0
    %501 = vmatpush1.msra.mxu0 0.0
    %502 = vmatprep.subr.mxu0 0.0
    %503 = vmatpush1.msra.mxu0 0.0
    %504 = vmatprep.subr.mxu0 0.0
    %505 = vmatpush1.msra.mxu0 0.0
    %506 = vmatprep.subr.mxu0 0.0
    %507 = vmatpush1.msra.mxu0 0.0
    %508 = vmatprep.subr.mxu0 0.0
    %509 = vmatpush1.msra.mxu0 0.0
    %510 = vmatprep.subr.mxu0 0.0
    %511 = vmatpush1.msra.mxu0 0.0
    %512 = vmatprep.subr.mxu0 0.0
    %513 = vmatpush1.msra.mxu0 0.0
    %514 = vmatprep.subr.mxu0 0.0
    %515 = vmatpush1.msra.mxu0 0.0
    %516 = vmatprep.subr.mxu0 0.0
    %517 = vmatpush1.msra.mxu0 0.0
    %518 = vmatprep.subr.mxu0 0.0
    %519 = vmatpush1.msra.mxu0 0.0
    %520 = vmatprep.subr.mxu0 0.0
    %521 = vmatpush1.msra.mxu0 0.0
    %522 = vmatprep.subr.mxu0 0.0
    %523 = vmatpush1.msra.mxu0 0.0
    %524 = vmatprep.subr.mxu0 0.0
    %525 = vmatpush1.msra.mxu0 0.0
    %526 = vmatprep.subr.mxu0 0.0
    %527 = vmatpush1.msra.mxu0 0.0
    %528 = vmatprep.subr.mxu0 0.0
    %529 = vmatpush1.msra.mxu0 0.0
    %530 = vmatprep.subr.mxu0 0.0
    %531 = vmatpush1.msra.mxu0 0.0
    %532 = vmatprep.subr.mxu0 0.0
    %533 = vmatpush1.msra.mxu0 0.0
    %534 = vmatprep.subr.mxu0 0.0
    %535 = vmatpush1.msra.mxu0 0.0
    %536 = vmatprep.subr.mxu0 0.0
    %537 = vmatpush1.msra.mxu0 0.0
    %538 = vmatprep.subr.mxu0 0.0
    %539 = vmatpush1.msra.mxu0 0.0
    %540 = vmatprep.subr.mxu0 0.0
    %541 = vmatpush1.msra.mxu0 0.0
    %542 = vmatprep.subr.mxu0 0.0
    %543 = vmatpush1.msra.mxu0 0.0
    %544 = vmatprep.subr.mxu0 0.0
    %545 = vmatpush1.msra.mxu0 0.0
    %546 = vmatprep.subr.mxu0 0.0
    %547 = vmatpush1.msra.mxu0 0.0
    %548 = vmatprep.mubr.f32.mxu0 0.0
    %549 = vmatmul.mubr.f32.gmra.mrb[0].mxu0 %v482
    %v550 = vpop.f32.mrb[0].mxu0
    %v551 = vadd.f32 %v480, %v550
    %v552 = vpop.f32.mrb[0].mxu0
    %553 = vdwg.mxu0
    %v554 = vtanh.pop %v551
    %v555 = vsub.f32 1.0, %v470
    %v556 = vmul.f32 %v555, %v388
    %v557 = vmul.f32 %v470, %v554
    %v558 = vadd.f32 %v556, %v557
    %s559 = scalar_lea.vmem [#allocation3], 8
    %560 = vst.msk [vmem:[%s559] sm:$0xff] %vm221, %v558
    %s561 = scalar_lea.vmem [#allocation2], 16
    %v562 = vld [vmem:[%s561] sm:$0xff]
    %v564 = vsel %vm221, %v558, 0
    %566 = vmatprep.subr.mxu0 0.0
    %567 = vmatpush1.msra.mxu0 %v211
    %568 = vmatprep.subr.mxu0 0.0
    %569 = vmatpush1.msra.mxu0 %v212
    %570 = vmatprep.subr.mxu0 0.0
    %571 = vmatpush1.msra.mxu0 %v213
    %572 = vmatprep.subr.mxu0 0.0
    %573 = vmatpush1.msra.mxu0 %v214
    %574 = vmatprep.subr.mxu0 0.0
    %575 = vmatpush1.msra.mxu0 0.0
    %576 = vmatprep.subr.mxu0 0.0
    %577 = vmatpush1.msra.mxu0 0.0
    %578 = vmatprep.subr.mxu0 0.0
    %579 = vmatpush1.msra.mxu0 0.0
    %580 = vmatprep.subr.mxu0 0.0
    %581 = vmatpush1.msra.mxu0 0.0
    %582 = vmatprep.subr.mxu0 0.0
    %583 = vmatpush1.msra.mxu0 0.0
    %584 = vmatprep.subr.mxu0 0.0
    %585 = vmatpush1.msra.mxu0 0.0
    %586 = vmatprep.subr.mxu0 0.0
    %587 = vmatpush1.msra.mxu0 0.0
    %588 = vmatprep.subr.mxu0 0.0
    %589 = vmatpush1.msra.mxu0 0.0
    %590 = vmatprep.subr.mxu0 0.0
    %591 = vmatpush1.msra.mxu0 0.0
    %592 = vmatprep.subr.mxu0 0.0
    %593 = vmatpush1.msra.mxu0 0.0
    %594 = vmatprep.subr.mxu0 0.0
    %595 = vmatpush1.msra.mxu0 0.0
    %596 = vmatprep.subr.mxu0 0.0
    %597 = vmatpush1.msra.mxu0 0.0
    %598 = vmatprep.subr.mxu0 0.0
    %599 = vmatpush1.msra.mxu0 0.0
    %600 = vmatprep.subr.mxu0 0.0
    %601 = vmatpush1.msra.mxu0 0.0
    %602 = vmatprep.subr.mxu0 0.0
    %603 = vmatpush1.msra.mxu0 0.0
    %604 = vmatprep.subr.mxu0 0.0
    %605 = vmatpush1.msra.mxu0 0.0
    %606 = vmatprep.subr.mxu0 0.0
    %607 = vmatpush1.msra.mxu0 0.0
    %608 = vmatprep.subr.mxu0 0.0
    %609 = vmatpush1.msra.mxu0 0.0
    %610 = vmatprep.subr.mxu0 0.0
    %611 = vmatpush1.msra.mxu0 0.0
    %612 = vmatprep.subr.mxu0 0.0
    %613 = vmatpush1.msra.mxu0 0.0
    %614 = vmatprep.subr.mxu0 0.0
    %615 = vmatpush1.msra.mxu0 0.0
    %616 = vmatprep.subr.mxu0 0.0
    %617 = vmatpush1.msra.mxu0 0.0
    %618 = vmatprep.subr.mxu0 0.0
    %619 = vmatpush1.msra.mxu0 0.0
    %620 = vmatprep.subr.mxu0 0.0
    %621 = vmatpush1.msra.mxu0 0.0
    %622 = vmatprep.subr.mxu0 0.0
    %623 = vmatpush1.msra.mxu0 0.0
    %624 = vmatprep.subr.mxu0 0.0
    %625 = vmatpush1.msra.mxu0 0.0
    %626 = vmatprep.subr.mxu0 0.0
    %627 = vmatpush1.msra.mxu0 0.0
    %628 = vmatprep.subr.mxu0 0.0
    %629 = vmatpush1.msra.mxu0 0.0
    %630 = vmatprep.mubr.f32.mxu0 0.0
    %631 = vmatmul.mubr.f32.gmra.mrb[0].mxu0 %v564
    %v632 = vpop.f32.mrb[0].mxu0
    %v633 = vadd.f32 %v562, %v632
    %v634 = vpop.f32.mrb[0].mxu0
    %635 = vdwg.mxu0
    %v636 = vxor.u32 %v633, 2147483648
    %v637 = vmul.f32 %v636, 1.442695
    %v638 = vpow.pop %v637
    %v639 = vadd.f32 %v638, 1.0
    %v640 = vrcp.pop %v639
    %v641 = vmul.f32 1.0, %v640
    %642 = vrot.lane.b32.xlu0 %v558, 32
    %v643 = vpop.permute.xlu0 %642
    %v645 = vmul.f32 %v641, %v643
    %647 = vrot.lane.b32.xlu0 %v645, 96
    %v648 = vpop.permute.xlu0 %647
    %650 = vrot.lane.b32.xlu0 %v562, 64
    %v651 = vpop.permute.xlu0 %650
    %v653 = vsel %vm221, %v648, 0
    %655 = vmatprep.subr.mxu0 0.0
    %656 = vmatpush1.msra.mxu0 %v215
    %657 = vmatprep.subr.mxu0 0.0
    %658 = vmatpush1.msra.mxu0 %v216
    %659 = vmatprep.subr.mxu0 0.0
    %660 = vmatpush1.msra.mxu0 %v217
    %661 = vmatprep.subr.mxu0 0.0
    %662 = vmatpush1.msra.mxu0 %v218
    %663 = vmatprep.subr.mxu0 0.0
    %664 = vmatpush1.msra.mxu0 0.0
    %665 = vmatprep.subr.mxu0 0.0
    %666 = vmatpush1.msra.mxu0 0.0
    %667 = vmatprep.subr.mxu0 0.0
    %668 = vmatpush1.msra.mxu0 0.0
    %669 = vmatprep.subr.mxu0 0.0
    %670 = vmatpush1.msra.mxu0 0.0
    %671 = vmatprep.subr.mxu0 0.0
    %672 = vmatpush1.msra.mxu0 0.0
    %673 = vmatprep.subr.mxu0 0.0
    %674 = vmatpush1.msra.mxu0 0.0
    %675 = vmatprep.subr.mxu0 0.0
    %676 = vmatpush1.msra.mxu0 0.0
    %677 = vmatprep.subr.mxu0 0.0
    %678 = vmatpush1.msra.mxu0 0.0
    %679 = vmatprep.subr.mxu0 0.0
    %680 = vmatpush1.msra.mxu0 0.0
    %681 = vmatprep.subr.mxu0 0.0
    %682 = vmatpush1.msra.mxu0 0.0
    %683 = vmatprep.subr.mxu0 0.0
    %684 = vmatpush1.msra.mxu0 0.0
    %685 = vmatprep.subr.mxu0 0.0
    %686 = vmatpush1.msra.mxu0 0.0
    %687 = vmatprep.subr.mxu0 0.0
    %688 = vmatpush1.msra.mxu0 0.0
    %689 = vmatprep.subr.mxu0 0.0
    %690 = vmatpush1.msra.mxu0 0.0
    %691 = vmatprep.subr.mxu0 0.0
    %692 = vmatpush1.msra.mxu0 0.0
    %693 = vmatprep.subr.mxu0 0.0
    %694 = vmatpush1.msra.mxu0 0.0
    %695 = vmatprep.subr.mxu0 0.0
    %696 = vmatpush1.msra.mxu0 0.0
    %697 = vmatprep.subr.mxu0 0.0
    %698 = vmatpush1.msra.mxu0 0.0
    %699 = vmatprep.subr.mxu0 0.0
    %700 = vmatpush1.msra.mxu0 0.0
    %701 = vmatprep.subr.mxu0 0.0
    %702 = vmatpush1.msra.mxu0 0.0
    %703 = vmatprep.subr.mxu0 0.0
    %704 = vmatpush1.msra.mxu0 0.0
    %705 = vmatprep.subr.mxu0 0.0
    %706 = vmatpush1.msra.mxu0 0.0
    %707 = vmatprep.subr.mxu0 0.0
    %708 = vmatpush1.msra.mxu0 0.0
    %709 = vmatprep.subr.mxu0 0.0
    %710 = vmatpush1.msra.mxu0 0.0
    %711 = vmatprep.subr.mxu0 0.0
    %712 = vmatpush1.msra.mxu0 0.0
    %713 = vmatprep.subr.mxu0 0.0
    %714 = vmatpush1.msra.mxu0 0.0
    %715 = vmatprep.subr.mxu0 0.0
    %716 = vmatpush1.msra.mxu0 0.0
    %717 = vmatprep.subr.mxu0 0.0
    %718 = vmatpush1.msra.mxu0 0.0
    %719 = vmatprep.mubr.f32.mxu0 0.0
    %720 = vmatmul.mubr.f32.gmra.mrb[0].mxu0 %v653
    %v721 = vpop.f32.mrb[0].mxu0
    %v722 = vadd.f32 %v651, %v721
    %v723 = vpop.f32.mrb[0].mxu0
    %724 = vdwg.mxu0
    %v725 = vtanh.pop %v722
    %v726 = vsub.f32 1.0, %v641
    %v727 = vmul.f32 %v726, %v558
    %v728 = vmul.f32 %v641, %v725
    %v729 = vadd.f32 %v727, %v728
    %s730 = scalar_lea.vmem [#allocation3], 16
    %731 = vst.msk [vmem:[%s730] sm:$0xff] %vm221, %v729
    %s732 = scalar_lea.vmem [#allocation2], 24
    %v733 = vld [vmem:[%s732] sm:$0xff]
    %v735 = vsel %vm221, %v729, 0
    %737 = vmatprep.subr.mxu0 0.0
    %738 = vmatpush1.msra.mxu0 %v211
    %739 = vmatprep.subr.mxu0 0.0
    %740 = vmatpush1.msra.mxu0 %v212
    %741 = vmatprep.subr.mxu0 0.0
    %742 = vmatpush1.msra.mxu0 %v213
    %743 = vmatprep.subr.mxu0 0.0
    %744 = vmatpush1.msra.mxu0 %v214
    %745 = vmatprep.subr.mxu0 0.0
    %746 = vmatpush1.msra.mxu0 0.0
    %747 = vmatprep.subr.mxu0 0.0
    %748 = vmatpush1.msra.mxu0 0.0
    %749 = vmatprep.subr.mxu0 0.0
    %750 = vmatpush1.msra.mxu0 0.0
    %751 = vmatprep.subr.mxu0 0.0
    %752 = vmatpush1.msra.mxu0 0.0
    %753 = vmatprep.subr.mxu0 0.0
    %754 = vmatpush1.msra.mxu0 0.0
    %755 = vmatprep.subr.mxu0 0.0
    %756 = vmatpush1.msra.mxu0 0.0
    %757 = vmatprep.subr.mxu0 0.0
    %758 = vmatpush1.msra.mxu0 0.0
    %759 = vmatprep.subr.mxu0 0.0
    %760 = vmatpush1.msra.mxu0 0.0
    %761 = vmatprep.subr.mxu0 0.0
    %762 = vmatpush1.msra.mxu0 0.0
    %763 = vmatprep.subr.mxu0 0.0
    %764 = vmatpush1.msra.mxu0 0.0
    %765 = vmatprep.subr.mxu0 0.0
    %766 = vmatpush1.msra.mxu0 0.0
    %767 = vmatprep.subr.mxu0 0.0
    %768 = vmatpush1.msra.mxu0 0.0
    %769 = vmatprep.subr.mxu0 0.0
    %770 = vmatpush1.msra.mxu0 0.0
    %771 = vmatprep.subr.mxu0 0.0
    %772 = vmatpush1.msra.mxu0 0.0
    %773 = vmatprep.subr.mxu0 0.0
    %774 = vmatpush1.msra.mxu0 0.0
    %775 = vmatprep.subr.mxu0 0.0
    %776 = vmatpush1.msra.mxu0 0.0
    %777 = vmatprep.subr.mxu0 0.0
    %778 = vmatpush1.msra.mxu0 0.0
    %779 = vmatprep.subr.mxu0 0.0
    %780 = vmatpush1.msra.mxu0 0.0
    %781 = vmatprep.subr.mxu0 0.0
    %782 = vmatpush1.msra.mxu0 0.0
    %783 = vmatprep.subr.mxu0 0.0
    %784 = vmatpush1.msra.mxu0 0.0
    %785 = vmatprep.subr.mxu0 0.0
    %786 = vmatpush1.msra.mxu0 0.0
    %787 = vmatprep.subr.mxu0 0.0
    %788 = vmatpush1.msra.mxu0 0.0
    %789 = vmatprep.subr.mxu0 0.0
    %790 = vmatpush1.msra.mxu0 0.0
    %791 = vmatprep.subr.mxu0 0.0
    %792 = vmatpush1.msra.mxu0 0.0
    %793 = vmatprep.subr.mxu0 0.0
    %794 = vmatpush1.msra.mxu0 0.0
    %795 = vmatprep.subr.mxu0 0.0
    %796 = vmatpush1.msra.mxu0 0.0
    %797 = vmatprep.subr.mxu0 0.0
    %798 = vmatpush1.msra.mxu0 0.0
    %799 = vmatprep.subr.mxu0 0.0
    %800 = vmatpush1.msra.mxu0 0.0
    %801 = vmatprep.mubr.f32.mxu0 0.0
    %802 = vmatmul.mubr.f32.gmra.mrb[0].mxu0 %v735
    %v803 = vpop.f32.mrb[0].mxu0
    %v804 = vadd.f32 %v733, %v803
    %v805 = vpop.f32.mrb[0].mxu0
    %806 = vdwg.mxu0
    %v807 = vxor.u32 %v804, 2147483648
    %v808 = vmul.f32 %v807, 1.442695
    %v809 = vpow.pop %v808
    %v810 = vadd.f32 %v809, 1.0
    %v811 = vrcp.pop %v810
    %v812 = vmul.f32 1.0, %v811
    %813 = vrot.lane.b32.xlu0 %v729, 32
    %v814 = vpop.permute.xlu0 %813
    %v816 = vmul.f32 %v812, %v814
    %818 = vrot.lane.b32.xlu0 %v816, 96
    %v819 = vpop.permute.xlu0 %818
    %821 = vrot.lane.b32.xlu0 %v733, 64
    %v822 = vpop.permute.xlu0 %821
    %v824 = vsel %vm221, %v819, 0
    %826 = vmatprep.subr.mxu0 0.0
    %827 = vmatpush1.msra.mxu0 %v215
    %828 = vmatprep.subr.mxu0 0.0
    %829 = vmatpush1.msra.mxu0 %v216
    %830 = vmatprep.subr.mxu0 0.0
    %831 = vmatpush1.msra.mxu0 %v217
    %832 = vmatprep.subr.mxu0 0.0
    %833 = vmatpush1.msra.mxu0 %v218
    %834 = vmatprep.subr.mxu0 0.0
    %835 = vmatpush1.msra.mxu0 0.0
    %836 = vmatprep.subr.mxu0 0.0
    %837 = vmatpush1.msra.mxu0 0.0
    %838 = vmatprep.subr.mxu0 0.0
    %839 = vmatpush1.msra.mxu0 0.0
    %840 = vmatprep.subr.mxu0 0.0
    %841 = vmatpush1.msra.mxu0 0.0
    %842 = vmatprep.subr.mxu0 0.0
    %843 = vmatpush1.msra.mxu0 0.0
    %844 = vmatprep.subr.mxu0 0.0
    %845 = vmatpush1.msra.mxu0 0.0
    %846 = vmatprep.subr.mxu0 0.0
    %847 = vmatpush1.msra.mxu0 0.0
    %848 = vmatprep.subr.mxu0 0.0
    %849 = vmatpush1.msra.mxu0 0.0
    %850 = vmatprep.subr.mxu0 0.0
    %851 = vmatpush1.msra.mxu0 0.0
    %852 = vmatprep.subr.mxu0 0.0
    %853 = vmatpush1.msra.mxu0 0.0
    %854 = vmatprep.subr.mxu0 0.0
    %855 = vmatpush1.msra.mxu0 0.0
    %856 = vmatprep.subr.mxu0 0.0
    %857 = vmatpush1.msra.mxu0 0.0
    %858 = vmatprep.subr.mxu0 0.0
    %859 = vmatpush1.msra.mxu0 0.0
    %860 = vmatprep.subr.mxu0 0.0
    %861 = vmatpush1.msra.mxu0 0.0
    %862 = vmatprep.subr.mxu0 0.0
    %863 = vmatpush1.msra.mxu0 0.0
    %864 = vmatprep.subr.mxu0 0.0
    %865 = vmatpush1.msra.mxu0 0.0
    %866 = vmatprep.subr.mxu0 0.0
    %867 = vmatpush1.msra.mxu0 0.0
    %868 = vmatprep.subr.mxu0 0.0
    %869 = vmatpush1.msra.mxu0 0.0
    %870 = vmatprep.subr.mxu0 0.0
    %871 = vmatpush1.msra.mxu0 0.0
    %872 = vmatprep.subr.mxu0 0.0
    %873 = vmatpush1.msra.mxu0 0.0
    %874 = vmatprep.subr.mxu0 0.0
    %875 = vmatpush1.msra.mxu0 0.0
    %876 = vmatprep.subr.mxu0 0.0
    %877 = vmatpush1.msra.mxu0 0.0
    %878 = vmatprep.subr.mxu0 0.0
    %879 = vmatpush1.msra.mxu0 0.0
    %880 = vmatprep.subr.mxu0 0.0
    %881 = vmatpush1.msra.mxu0 0.0
    %882 = vmatprep.subr.mxu0 0.0
    %883 = vmatpush1.msra.mxu0 0.0
    %884 = vmatprep.subr.mxu0 0.0
    %885 = vmatpush1.msra.mxu0 0.0
    %886 = vmatprep.subr.mxu0 0.0
    %887 = vmatpush1.msra.mxu0 0.0
    %888 = vmatprep.subr.mxu0 0.0
    %889 = vmatpush1.msra.mxu0 0.0
    %890 = vmatprep.mubr.f32.mxu0 0.0
    %891 = vmatmul.mubr.f32.gmra.mrb[0].mxu0 %v824
    %v892 = vpop.f32.mrb[0].mxu0
    %v893 = vadd.f32 %v822, %v892
    %v894 = vpop.f32.mrb[0].mxu0
    %895 = vdwg.mxu0
    %v896 = vtanh.pop %v893
    %v897 = vsub.f32 1.0, %v812
    %v898 = vmul.f32 %v897, %v729
    %v899 = vmul.f32 %v812, %v896
    %v900 = vadd.f32 %v898, %v899
    %s901 = scalar_lea.vmem [#allocation3], 24
    %902 = vst.msk [vmem:[%s901] sm:$0xff] %vm221, %v900
    %s903 = scalar_lea.vmem [#allocation2], 32
    %v904 = vld [vmem:[%s903] sm:$0xff]
    %v906 = vsel %vm221, %v900, 0
    %908 = vmatprep.subr.mxu0 0.0
    %909 = vmatpush1.msra.mxu0 %v211
    %910 = vmatprep.subr.mxu0 0.0
    %911 = vmatpush1.msra.mxu0 %v212
    %912 = vmatprep.subr.mxu0 0.0
    %913 = vmatpush1.msra.mxu0 %v213
    %914 = vmatprep.subr.mxu0 0.0
    %915 = vmatpush1.msra.mxu0 %v214
    %916 = vmatprep.subr.mxu0 0.0
    %917 = vmatpush1.msra.mxu0 0.0
    %918 = vmatprep.subr.mxu0 0.0
    %919 = vmatpush1.msra.mxu0 0.0
    %920 = vmatprep.subr.mxu0 0.0
    %921 = vmatpush1.msra.mxu0 0.0
    %922 = vmatprep.subr.mxu0 0.0
    %923 = vmatpush1.msra.mxu0 0.0
    %924 = vmatprep.subr.mxu0 0.0
    %925 = vmatpush1.msra.mxu0 0.0
    %926 = vmatprep.subr.mxu0 0.0
    %927 = vmatpush1.msra.mxu0 0.0
    %928 = vmatprep.subr.mxu0 0.0
    %929 = vmatpush1.msra.mxu0 0.0
    %930 = vmatprep.subr.mxu0 0.0
    %931 = vmatpush1.msra.mxu0 0.0
    %932 = vmatprep.subr.mxu0 0.0
    %933 = vmatpush1.msra.mxu0 0.0
    %934 = vmatprep.subr.mxu0 0.0
    %935 = vmatpush1.msra.mxu0 0.0
    %936 = vmatprep.subr.mxu0 0.0
    %937 = vmatpush1.msra.mxu0 0.0
    %938 = vmatprep.subr.mxu0 0.0
    %939 = vmatpush1.msra.mxu0 0.0
    %940 = vmatprep.subr.mxu0 0.0
    %941 = vmatpush1.msra.mxu0 0.0
    %942 = vmatprep.subr.mxu0 0.0
    %943 = vmatpush1.msra.mxu0 0.0
    %944 = vmatprep.subr.mxu0 0.0
    %945 = vmatpush1.msra.mxu0 0.0
    %946 = vmatprep.subr.mxu0 0.0
    %947 = vmatpush1.msra.mxu0 0.0
    %948 = vmatprep.subr.mxu0 0.0
    %949 = vmatpush1.msra.mxu0 0.0
    %950 = vmatprep.subr.mxu0 0.0
    %951 = vmatpush1.msra.mxu0 0.0
    %952 = vmatprep.subr.mxu0 0.0
    %953 = vmatpush1.msra.mxu0 0.0
    %954 = vmatprep.subr.mxu0 0.0
    %955 = vmatpush1.msra.mxu0 0.0
    %956 = vmatprep.subr.mxu0 0.0
    %957 = vmatpush1.msra.mxu0 0.0
    %958 = vmatprep.subr.mxu0 0.0
    %959 = vmatpush1.msra.mxu0 0.0
    %960 = vmatprep.subr.mxu0 0.0
    %961 = vmatpush1.msra.mxu0 0.0
    %962 = vmatprep.subr.mxu0 0.0
    %963 = vmatpush1.msra.mxu0 0.0
    %964 = vmatprep.subr.mxu0 0.0
    %965 = vmatpush1.msra.mxu0 0.0
    %966 = vmatprep.subr.mxu0 0.0
    %967 = vmatpush1.msra.mxu0 0.0
    %968 = vmatprep.subr.mxu0 0.0
    %969 = vmatpush1.msra.mxu0 0.0
    %970 = vmatprep.subr.mxu0 0.0
    %971 = vmatpush1.msra.mxu0 0.0
    %972 = vmatprep.mubr.f32.mxu0 0.0
    %973 = vmatmul.mubr.f32.gmra.mrb[0].mxu0 %v906
    %v974 = vpop.f32.mrb[0].mxu0
    %v975 = vadd.f32 %v904, %v974
    %v976 = vpop.f32.mrb[0].mxu0
    %977 = vdwg.mxu0
    %v978 = vxor.u32 %v975, 2147483648
    %v979 = vmul.f32 %v978, 1.442695
    %v980 = vpow.pop %v979
    %v981 = vadd.f32 %v980, 1.0
    %v982 = vrcp.pop %v981
    %v983 = vmul.f32 1.0, %v982
    %984 = vrot.lane.b32.xlu0 %v900, 32
    %v985 = vpop.permute.xlu0 %984
    %v987 = vmul.f32 %v983, %v985
    %989 = vrot.lane.b32.xlu0 %v987, 96
    %v990 = vpop.permute.xlu0 %989
    %992 = vrot.lane.b32.xlu0 %v904, 64
    %v993 = vpop.permute.xlu0 %992
    %v995 = vsel %vm221, %v990, 0
    %997 = vmatprep.subr.mxu0 0.0
    %998 = vmatpush1.msra.mxu0 %v215
    %999 = vmatprep.subr.mxu0 0.0
    %1000 = vmatpush1.msra.mxu0 %v216
    %1001 = vmatprep.subr.mxu0 0.0
    %1002 = vmatpush1.msra.mxu0 %v217
    %1003 = vmatprep.subr.mxu0 0.0
    %1004 = vmatpush1.msra.mxu0 %v218
    %1005 = vmatprep.subr.mxu0 0.0
    %1006 = vmatpush1.msra.mxu0 0.0
    %1007 = vmatprep.subr.mxu0 0.0
    %1008 = vmatpush1.msra.mxu0 0.0
    %1009 = vmatprep.subr.mxu0 0.0
    %1010 = vmatpush1.msra.mxu0 0.0
    %1011 = vmatprep.subr.mxu0 0.0
    %1012 = vmatpush1.msra.mxu0 0.0
    %1013 = vmatprep.subr.mxu0 0.0
    %1014 = vmatpush1.msra.mxu0 0.0
    %1015 = vmatprep.subr.mxu0 0.0
    %1016 = vmatpush1.msra.mxu0 0.0
    %1017 = vmatprep.subr.mxu0 0.0
    %1018 = vmatpush1.msra.mxu0 0.0
    %1019 = vmatprep.subr.mxu0 0.0
    %1020 = vmatpush1.msra.mxu0 0.0
    %1021 = vmatprep.subr.mxu0 0.0
    %1022 = vmatpush1.msra.mxu0 0.0
    %1023 = vmatprep.subr.mxu0 0.0
    %1024 = vmatpush1.msra.mxu0 0.0
    %1025 = vmatprep.subr.mxu0 0.0
    %1026 = vmatpush1.msra.mxu0 0.0
    %1027 = vmatprep.subr.mxu0 0.0
    %1028 = vmatpush1.msra.mxu0 0.0
    %1029 = vmatprep.subr.mxu0 0.0
    %1030 = vmatpush1.msra.mxu0 0.0
    %1031 = vmatprep.subr.mxu0 0.0
    %1032 = vmatpush1.msra.mxu0 0.0
    %1033 = vmatprep.subr.mxu0 0.0
    %1034 = vmatpush1.msra.mxu0 0.0
    %1035 = vmatprep.subr.mxu0 0.0
    %1036 = vmatpush1.msra.mxu0 0.0
    %1037 = vmatprep.subr.mxu0 0.0
    %1038 = vmatpush1.msra.mxu0 0.0
    %1039 = vmatprep.subr.mxu0 0.0
    %1040 = vmatpush1.msra.mxu0 0.0
    %1041 = vmatprep.subr.mxu0 0.0
    %1042 = vmatpush1.msra.mxu0 0.0
    %1043 = vmatprep.subr.mxu0 0.0
    %1044 = vmatpush1.msra.mxu0 0.0
    %1045 = vmatprep.subr.mxu0 0.0
    %1046 = vmatpush1.msra.mxu0 0.0
    %1047 = vmatprep.subr.mxu0 0.0
    %1048 = vmatpush1.msra.mxu0 0.0
    %1049 = vmatprep.subr.mxu0 0.0
    %1050 = vmatpush1.msra.mxu0 0.0
    %1051 = vmatprep.subr.mxu0 0.0
    %1052 = vmatpush1.msra.mxu0 0.0
    %1053 = vmatprep.subr.mxu0 0.0
    %1054 = vmatpush1.msra.mxu0 0.0
    %1055 = vmatprep.subr.mxu0 0.0
    %1056 = vmatpush1.msra.mxu0 0.0
    %1057 = vmatprep.subr.mxu0 0.0
    %1058 = vmatpush1.msra.mxu0 0.0
    %1059 = vmatprep.subr.mxu0 0.0
    %1060 = vmatpush1.msra.mxu0 0.0
    %1061 = vmatprep.mubr.f32.mxu0 0.0
    %1062 = vmatmul.mubr.f32.gmra.mrb[0].mxu0 %v995
    %v1063 = vpop.f32.mrb[0].mxu0
    %v1064 = vadd.f32 %v993, %v1063
    %v1065 = vpop.f32.mrb[0].mxu0
    %1066 = vdwg.mxu0
    %v1067 = vtanh.pop %v1064
    %v1068 = vsub.f32 1.0, %v983
    %v1069 = vmul.f32 %v1068, %v900
    %v1070 = vmul.f32 %v983, %v1067
    %v1071 = vadd.f32 %v1069, %v1070
    %s1072 = scalar_lea.vmem [#allocation3], 32
    %1073 = vst.msk [vmem:[%s1072] sm:$0xff] %vm221, %v1071
    %s1074 = scalar_lea.vmem [#allocation2], 40
    %v1075 = vld [vmem:[%s1074] sm:$0xff]
    %v1077 = vsel %vm221, %v1071, 0
    %1079 = vmatprep.subr.mxu0 0.0
    %1080 = vmatpush1.msra.mxu0 %v211
    %1081 = vmatprep.subr.mxu0 0.0
    %1082 = vmatpush1.msra.mxu0 %v212
    %1083 = vmatprep.subr.mxu0 0.0
    %1084 = vmatpush1.msra.mxu0 %v213
    %1085 = vmatprep.subr.mxu0 0.0
    %1086 = vmatpush1.msra.mxu0 %v214
    %1087 = vmatprep.subr.mxu0 0.0
    %1088 = vmatpush1.msra.mxu0 0.0
    %1089 = vmatprep.subr.mxu0 0.0
    %1090 = vmatpush1.msra.mxu0 0.0
    %1091 = vmatprep.subr.mxu0 0.0
    %1092 = vmatpush1.msra.mxu0 0.0
    %1093 = vmatprep.subr.mxu0 0.0
    %1094 = vmatpush1.msra.mxu0 0.0
    %1095 = vmatprep.subr.mxu0 0.0
    %1096 = vmatpush1.msra.mxu0 0.0
    %1097 = vmatprep.subr.mxu0 0.0
    %1098 = vmatpush1.msra.mxu0 0.0
    %1099 = vmatprep.subr.mxu0 0.0
    %1100 = vmatpush1.msra.mxu0 0.0
    %1101 = vmatprep.subr.mxu0 0.0
    %1102 = vmatpush1.msra.mxu0 0.0
    %1103 = vmatprep.subr.mxu0 0.0
    %1104 = vmatpush1.msra.mxu0 0.0
    %1105 = vmatprep.subr.mxu0 0.0
    %1106 = vmatpush1.msra.mxu0 0.0
    %1107 = vmatprep.subr.mxu0 0.0
    %1108 = vmatpush1.msra.mxu0 0.0
    %1109 = vmatprep.subr.mxu0 0.0
    %1110 = vmatpush1.msra.mxu0 0.0
    %1111 = vmatprep.subr.mxu0 0.0
    %1112 = vmatpush1.msra.mxu0 0.0
    %1113 = vmatprep.subr.mxu0 0.0
    %1114 = vmatpush1.msra.mxu0 0.0
    %1115 = vmatprep.subr.mxu0 0.0
    %1116 = vmatpush1.msra.mxu0 0.0
    %1117 = vmatprep.subr.mxu0 0.0
    %1118 = vmatpush1.msra.mxu0 0.0
    %1119 = vmatprep.subr.mxu0 0.0
    %1120 = vmatpush1.msra.mxu0 0.0
    %1121 = vmatprep.subr.mxu0 0.0
    %1122 = vmatpush1.msra.mxu0 0.0
    %1123 = vmatprep.subr.mxu0 0.0
    %1124 = vmatpush1.msra.mxu0 0.0
    %1125 = vmatprep.subr.mxu0 0.0
    %1126 = vmatpush1.msra.mxu0 0.0
    %1127 = vmatprep.subr.mxu0 0.0
    %1128 = vmatpush1.msra.mxu0 0.0
    %1129 = vmatprep.subr.mxu0 0.0
    %1130 = vmatpush1.msra.mxu0 0.0
    %1131 = vmatprep.subr.mxu0 0.0
    %1132 = vmatpush1.msra.mxu0 0.0
    %1133 = vmatprep.subr.mxu0 0.0
    %1134 = vmatpush1.msra.mxu0 0.0
    %1135 = vmatprep.subr.mxu0 0.0
    %1136 = vmatpush1.msra.mxu0 0.0
    %1137 = vmatprep.subr.mxu0 0.0
    %1138 = vmatpush1.msra.mxu0 0.0
    %1139 = vmatprep.subr.mxu0 0.0
    %1140 = vmatpush1.msra.mxu0 0.0
    %1141 = vmatprep.subr.mxu0 0.0
    %1142 = vmatpush1.msra.mxu0 0.0
    %1143 = vmatprep.mubr.f32.mxu0 0.0
    %1144 = vmatmul.mubr.f32.gmra.mrb[0].mxu0 %v1077
    %v1145 = vpop.f32.mrb[0].mxu0
    %v1146 = vadd.f32 %v1075, %v1145
    %v1147 = vpop.f32.mrb[0].mxu0
    %1148 = vdwg.mxu0
    %v1149 = vxor.u32 %v1146, 2147483648
    %v1150 = vmul.f32 %v1149, 1.442695
    %v1151 = vpow.pop %v1150
    %v1152 = vadd.f32 %v1151, 1.0
    %v1153 = vrcp.pop %v1152
    %v1154 = vmul.f32 1.0, %v1153
    %1155 = vrot.lane.b32.xlu0 %v1071, 32
    %v1156 = vpop.permute.xlu0 %1155
    %v1158 = vmul.f32 %v1154, %v1156
    %1160 = vrot.lane.b32.xlu0 %v1158, 96
    %v1161 = vpop.permute.xlu0 %1160
    %1163 = vrot.lane.b32.xlu0 %v1075, 64
    %v1164 = vpop.permute.xlu0 %1163
    %v1166 = vsel %vm221, %v1161, 0
    %1168 = vmatprep.subr.mxu0 0.0
    %1169 = vmatpush1.msra.mxu0 %v215
    %1170 = vmatprep.subr.mxu0 0.0
    %1171 = vmatpush1.msra.mxu0 %v216
    %1172 = vmatprep.subr.mxu0 0.0
    %1173 = vmatpush1.msra.mxu0 %v217
    %1174 = vmatprep.subr.mxu0 0.0
    %1175 = vmatpush1.msra.mxu0 %v218
    %1176 = vmatprep.subr.mxu0 0.0
    %1177 = vmatpush1.msra.mxu0 0.0
    %1178 = vmatprep.subr.mxu0 0.0
    %1179 = vmatpush1.msra.mxu0 0.0
    %1180 = vmatprep.subr.mxu0 0.0
    %1181 = vmatpush1.msra.mxu0 0.0
    %1182 = vmatprep.subr.mxu0 0.0
    %1183 = vmatpush1.msra.mxu0 0.0
    %1184 = vmatprep.subr.mxu0 0.0
    %1185 = vmatpush1.msra.mxu0 0.0
    %1186 = vmatprep.subr.mxu0 0.0
    %1187 = vmatpush1.msra.mxu0 0.0
    %1188 = vmatprep.subr.mxu0 0.0
    %1189 = vmatpush1.msra.mxu0 0.0
    %1190 = vmatprep.subr.mxu0 0.0
    %1191 = vmatpush1.msra.mxu0 0.0
    %1192 = vmatprep.subr.mxu0 0.0
    %1193 = vmatpush1.msra.mxu0 0.0
    %1194 = vmatprep.subr.mxu0 0.0
    %1195 = vmatpush1.msra.mxu0 0.0
    %1196 = vmatprep.subr.mxu0 0.0
    %1197 = vmatpush1.msra.mxu0 0.0
    %1198 = vmatprep.subr.mxu0 0.0
    %1199 = vmatpush1.msra.mxu0 0.0
    %1200 = vmatprep.subr.mxu0 0.0
    %1201 = vmatpush1.msra.mxu0 0.0
    %1202 = vmatprep.subr.mxu0 0.0
    %1203 = vmatpush1.msra.mxu0 0.0
    %1204 = vmatprep.subr.mxu0 0.0
    %1205 = vmatpush1.msra.mxu0 0.0
    %1206 = vmatprep.subr.mxu0 0.0
    %1207 = vmatpush1.msra.mxu0 0.0
    %1208 = vmatprep.subr.mxu0 0.0
    %1209 = vmatpush1.msra.mxu0 0.0
    %1210 = vmatprep.subr.mxu0 0.0
    %1211 = vmatpush1.msra.mxu0 0.0
    %1212 = vmatprep.subr.mxu0 0.0
    %1213 = vmatpush1.msra.mxu0 0.0
    %1214 = vmatprep.subr.mxu0 0.0
    %1215 = vmatpush1.msra.mxu0 0.0
    %1216 = vmatprep.subr.mxu0 0.0
    %1217 = vmatpush1.msra.mxu0 0.0
    %1218 = vmatprep.subr.mxu0 0.0
    %1219 = vmatpush1.msra.mxu0 0.0
    %1220 = vmatprep.subr.mxu0 0.0
    %1221 = vmatpush1.msra.mxu0 0.0
    %1222 = vmatprep.subr.mxu0 0.0
    %1223 = vmatpush1.msra.mxu0 0.0
    %1224 = vmatprep.subr.mxu0 0.0
    %1225 = vmatpush1.msra.mxu0 0.0
    %1226 = vmatprep.subr.mxu0 0.0
    %1227 = vmatpush1.msra.mxu0 0.0
    %1228 = vmatprep.subr.mxu0 0.0
    %1229 = vmatpush1.msra.mxu0 0.0
    %1230 = vmatprep.subr.mxu0 0.0
    %1231 = vmatpush1.msra.mxu0 0.0
    %1232 = vmatprep.mubr.f32.mxu0 0.0
    %1233 = vmatmul.mubr.f32.gmra.mrb[0].mxu0 %v1166
    %v1234 = vpop.f32.mrb[0].mxu0
    %v1235 = vadd.f32 %v1164, %v1234
    %v1236 = vpop.f32.mrb[0].mxu0
    %1237 = vdwg.mxu0
    %v1238 = vtanh.pop %v1235
    %v1239 = vsub.f32 1.0, %v1154
    %v1240 = vmul.f32 %v1239, %v1071
    %v1241 = vmul.f32 %v1154, %v1238
    %v1242 = vadd.f32 %v1240, %v1241
    %s1243 = scalar_lea.vmem [#allocation3], 40
    %1244 = vst.msk [vmem:[%s1243] sm:$0xff] %vm221, %v1242
    %s1245 = scalar_lea.vmem [#allocation2], 48
    %v1246 = vld [vmem:[%s1245] sm:$0xff]
    %v1248 = vsel %vm221, %v1242, 0
    %1250 = vmatprep.subr.mxu0 0.0
    %1251 = vmatpush1.msra.mxu0 %v211
    %1252 = vmatprep.subr.mxu0 0.0
    %1253 = vmatpush1.msra.mxu0 %v212
    %1254 = vmatprep.subr.mxu0 0.0
    %1255 = vmatpush1.msra.mxu0 %v213
    %1256 = vmatprep.subr.mxu0 0.0
    %1257 = vmatpush1.msra.mxu0 %v214
    %1258 = vmatprep.subr.mxu0 0.0
    %1259 = vmatpush1.msra.mxu0 0.0
    %1260 = vmatprep.subr.mxu0 0.0
    %1261 = vmatpush1.msra.mxu0 0.0
    %1262 = vmatprep.subr.mxu0 0.0
    %1263 = vmatpush1.msra.mxu0 0.0
    %1264 = vmatprep.subr.mxu0 0.0
    %1265 = vmatpush1.msra.mxu0 0.0
    %1266 = vmatprep.subr.mxu0 0.0
    %1267 = vmatpush1.msra.mxu0 0.0
    %1268 = vmatprep.subr.mxu0 0.0
    %1269 = vmatpush1.msra.mxu0 0.0
    %1270 = vmatprep.subr.mxu0 0.0
    %1271 = vmatpush1.msra.mxu0 0.0
    %1272 = vmatprep.subr.mxu0 0.0
    %1273 = vmatpush1.msra.mxu0 0.0
    %1274 = vmatprep.subr.mxu0 0.0
    %1275 = vmatpush1.msra.mxu0 0.0
    %1276 = vmatprep.subr.mxu0 0.0
    %1277 = vmatpush1.msra.mxu0 0.0
    %1278 = vmatprep.subr.mxu0 0.0
    %1279 = vmatpush1.msra.mxu0 0.0
    %1280 = vmatprep.subr.mxu0 0.0
    %1281 = vmatpush1.msra.mxu0 0.0
    %1282 = vmatprep.subr.mxu0 0.0
    %1283 = vmatpush1.msra.mxu0 0.0
    %1284 = vmatprep.subr.mxu0 0.0
    %1285 = vmatpush1.msra.mxu0 0.0
    %1286 = vmatprep.subr.mxu0 0.0
    %1287 = vmatpush1.msra.mxu0 0.0
    %1288 = vmatprep.subr.mxu0 0.0
    %1289 = vmatpush1.msra.mxu0 0.0
    %1290 = vmatprep.subr.mxu0 0.0
    %1291 = vmatpush1.msra.mxu0 0.0
    %1292 = vmatprep.subr.mxu0 0.0
    %1293 = vmatpush1.msra.mxu0 0.0
    %1294 = vmatprep.subr.mxu0 0.0
    %1295 = vmatpush1.msra.mxu0 0.0
    %1296 = vmatprep.subr.mxu0 0.0
    %1297 = vmatpush1.msra.mxu0 0.0
    %1298 = vmatprep.subr.mxu0 0.0
    %1299 = vmatpush1.msra.mxu0 0.0
    %1300 = vmatprep.subr.mxu0 0.0
    %1301 = vmatpush1.msra.mxu0 0.0
    %1302 = vmatprep.subr.mxu0 0.0
    %1303 = vmatpush1.msra.mxu0 0.0
    %1304 = vmatprep.subr.mxu0 0.0
    %1305 = vmatpush1.msra.mxu0 0.0
    %1306 = vmatprep.subr.mxu0 0.0
    %1307 = vmatpush1.msra.mxu0 0.0
    %1308 = vmatprep.subr.mxu0 0.0
    %1309 = vmatpush1.msra.mxu0 0.0
    %1310 = vmatprep.subr.mxu0 0.0
    %1311 = vmatpush1.msra.mxu0 0.0
    %1312 = vmatprep.subr.mxu0 0.0
    %1313 = vmatpush1.msra.mxu0 0.0
    %1314 = vmatprep.mubr.f32.mxu0 0.0
    %1315 = vmatmul.mubr.f32.gmra.mrb[0].mxu0 %v1248
    %v1316 = vpop.f32.mrb[0].mxu0
    %v1317 = vadd.f32 %v1246, %v1316
    %v1318 = vpop.f32.mrb[0].mxu0
    %1319 = vdwg.mxu0
    %v1320 = vxor.u32 %v1317, 2147483648
    %v1321 = vmul.f32 %v1320, 1.442695
    %v1322 = vpow.pop %v1321
    %v1323 = vadd.f32 %v1322, 1.0
    %v1324 = vrcp.pop %v1323
    %v1325 = vmul.f32 1.0, %v1324
    %1326 = vrot.lane.b32.xlu0 %v1242, 32
    %v1327 = vpop.permute.xlu0 %1326
    %v1329 = vmul.f32 %v1325, %v1327
    %1331 = vrot.lane.b32.xlu0 %v1329, 96
    %v1332 = vpop.permute.xlu0 %1331
    %1334 = vrot.lane.b32.xlu0 %v1246, 64
    %v1335 = vpop.permute.xlu0 %1334
    %v1337 = vsel %vm221, %v1332, 0
    %1339 = vmatprep.subr.mxu0 0.0
    %1340 = vmatpush1.msra.mxu0 %v215
    %1341 = vmatprep.subr.mxu0 0.0
    %1342 = vmatpush1.msra.mxu0 %v216
    %1343 = vmatprep.subr.mxu0 0.0
    %1344 = vmatpush1.msra.mxu0 %v217
    %1345 = vmatprep.subr.mxu0 0.0
    %1346 = vmatpush1.msra.mxu0 %v218
    %1347 = vmatprep.subr.mxu0 0.0
    %1348 = vmatpush1.msra.mxu0 0.0
    %1349 = vmatprep.subr.mxu0 0.0
    %1350 = vmatpush1.msra.mxu0 0.0
    %1351 = vmatprep.subr.mxu0 0.0
    %1352 = vmatpush1.msra.mxu0 0.0
    %1353 = vmatprep.subr.mxu0 0.0
    %1354 = vmatpush1.msra.mxu0 0.0
    %1355 = vmatprep.subr.mxu0 0.0
    %1356 = vmatpush1.msra.mxu0 0.0
    %1357 = vmatprep.subr.mxu0 0.0
    %1358 = vmatpush1.msra.mxu0 0.0
    %1359 = vmatprep.subr.mxu0 0.0
    %1360 = vmatpush1.msra.mxu0 0.0
    %1361 = vmatprep.subr.mxu0 0.0
    %1362 = vmatpush1.msra.mxu0 0.0
    %1363 = vmatprep.subr.mxu0 0.0
    %1364 = vmatpush1.msra.mxu0 0.0
    %1365 = vmatprep.subr.mxu0 0.0
    %1366 = vmatpush1.msra.mxu0 0.0
    %1367 = vmatprep.subr.mxu0 0.0
    %1368 = vmatpush1.msra.mxu0 0.0
    %1369 = vmatprep.subr.mxu0 0.0
    %1370 = vmatpush1.msra.mxu0 0.0
    %1371 = vmatprep.subr.mxu0 0.0
    %1372 = vmatpush1.msra.mxu0 0.0
    %1373 = vmatprep.subr.mxu0 0.0
    %1374 = vmatpush1.msra.mxu0 0.0
    %1375 = vmatprep.subr.mxu0 0.0
    %1376 = vmatpush1.msra.mxu0 0.0
    %1377 = vmatprep.subr.mxu0 0.0
    %1378 = vmatpush1.msra.mxu0 0.0
    %1379 = vmatprep.subr.mxu0 0.0
    %1380 = vmatpush1.msra.mxu0 0.0
    %1381 = vmatprep.subr.mxu0 0.0
    %1382 = vmatpush1.msra.mxu0 0.0
    %1383 = vmatprep.subr.mxu0 0.0
    %1384 = vmatpush1.msra.mxu0 0.0
    %1385 = vmatprep.subr.mxu0 0.0
    %1386 = vmatpush1.msra.mxu0 0.0
    %1387 = vmatprep.subr.mxu0 0.0
    %1388 = vmatpush1.msra.mxu0 0.0
    %1389 = vmatprep.subr.mxu0 0.0
    %1390 = vmatpush1.msra.mxu0 0.0
    %1391 = vmatprep.subr.mxu0 0.0
    %1392 = vmatpush1.msra.mxu0 0.0
    %1393 = vmatprep.subr.mxu0 0.0
    %1394 = vmatpush1.msra.mxu0 0.0
    %1395 = vmatprep.subr.mxu0 0.0
    %1396 = vmatpush1.msra.mxu0 0.0
    %1397 = vmatprep.subr.mxu0 0.0
    %1398 = vmatpush1.msra.mxu0 0.0
    %1399 = vmatprep.subr.mxu0 0.0
    %1400 = vmatpush1.msra.mxu0 0.0
    %1401 = vmatprep.subr.mxu0 0.0
    %1402 = vmatpush1.msra.mxu0 0.0
    %1403 = vmatprep.mubr.f32.mxu0 0.0
    %1404 = vmatmul.mubr.f32.gmra.mrb[0].mxu0 %v1337
    %v1405 = vpop.f32.mrb[0].mxu0
    %v1406 = vadd.f32 %v1335, %v1405
    %v1407 = vpop.f32.mrb[0].mxu0
    %1408 = vdwg.mxu0
    %v1409 = vtanh.pop %v1406
    %v1410 = vsub.f32 1.0, %v1325
    %v1411 = vmul.f32 %v1410, %v1242
    %v1412 = vmul.f32 %v1325, %v1409
    %v1413 = vadd.f32 %v1411, %v1412
    %s1414 = scalar_lea.vmem [#allocation3], 48
    %1415 = vst.msk [vmem:[%s1414] sm:$0xff] %vm221, %v1413
    %s1416 = scalar_lea.vmem [#allocation2], 56
    %v1417 = vld [vmem:[%s1416] sm:$0xff]
    %v1419 = vsel %vm221, %v1413, 0
    %1421 = vmatprep.subr.mxu0 0.0
    %1422 = vmatpush1.msra.mxu0 %v211
    %1423 = vmatprep.subr.mxu0 0.0
    %1424 = vmatpush1.msra.mxu0 %v212
    %1425 = vmatprep.subr.mxu0 0.0
    %1426 = vmatpush1.msra.mxu0 %v213
    %1427 = vmatprep.subr.mxu0 0.0
    %1428 = vmatpush1.msra.mxu0 %v214
    %1429 = vmatprep.subr.mxu0 0.0
    %1430 = vmatpush1.msra.mxu0 0.0
    %1431 = vmatprep.subr.mxu0 0.0
    %1432 = vmatpush1.msra.mxu0 0.0
    %1433 = vmatprep.subr.mxu0 0.0
    %1434 = vmatpush1.msra.mxu0 0.0
    %1435 = vmatprep.subr.mxu0 0.0
    %1436 = vmatpush1.msra.mxu0 0.0
    %1437 = vmatprep.subr.mxu0 0.0
    %1438 = vmatpush1.msra.mxu0 0.0
    %1439 = vmatprep.subr.mxu0 0.0
    %1440 = vmatpush1.msra.mxu0 0.0
    %1441 = vmatprep.subr.mxu0 0.0
    %1442 = vmatpush1.msra.mxu0 0.0
    %1443 = vmatprep.subr.mxu0 0.0
    %1444 = vmatpush1.msra.mxu0 0.0
    %1445 = vmatprep.subr.mxu0 0.0
    %1446 = vmatpush1.msra.mxu0 0.0
    %1447 = vmatprep.subr.mxu0 0.0
    %1448 = vmatpush1.msra.mxu0 0.0
    %1449 = vmatprep.subr.mxu0 0.0
    %1450 = vmatpush1.msra.mxu0 0.0
    %1451 = vmatprep.subr.mxu0 0.0
    %1452 = vmatpush1.msra.mxu0 0.0
    %1453 = vmatprep.subr.mxu0 0.0
    %1454 = vmatpush1.msra.mxu0 0.0
    %1455 = vmatprep.subr.mxu0 0.0
    %1456 = vmatpush1.msra.mxu0 0.0
    %1457 = vmatprep.subr.mxu0 0.0
    %1458 = vmatpush1.msra.mxu0 0.0
    %1459 = vmatprep.subr.mxu0 0.0
    %1460 = vmatpush1.msra.mxu0 0.0
    %1461 = vmatprep.subr.mxu0 0.0
    %1462 = vmatpush1.msra.mxu0 0.0
    %1463 = vmatprep.subr.mxu0 0.0
    %1464 = vmatpush1.msra.mxu0 0.0
    %1465 = vmatprep.subr.mxu0 0.0
    %1466 = vmatpush1.msra.mxu0 0.0
    %1467 = vmatprep.subr.mxu0 0.0
    %1468 = vmatpush1.msra.mxu0 0.0
    %1469 = vmatprep.subr.mxu0 0.0
    %1470 = vmatpush1.msra.mxu0 0.0
    %1471 = vmatprep.subr.mxu0 0.0
    %1472 = vmatpush1.msra.mxu0 0.0
    %1473 = vmatprep.subr.mxu0 0.0
    %1474 = vmatpush1.msra.mxu0 0.0
    %1475 = vmatprep.subr.mxu0 0.0
    %1476 = vmatpush1.msra.mxu0 0.0
    %1477 = vmatprep.subr.mxu0 0.0
    %1478 = vmatpush1.msra.mxu0 0.0
    %1479 = vmatprep.subr.mxu0 0.0
    %1480 = vmatpush1.msra.mxu0 0.0
    %1481 = vmatprep.subr.mxu0 0.0
    %1482 = vmatpush1.msra.mxu0 0.0
    %1483 = vmatprep.subr.mxu0 0.0
    %1484 = vmatpush1.msra.mxu0 0.0
    %1485 = vmatprep.mubr.f32.mxu0 0.0
    %1486 = vmatmul.mubr.f32.gmra.mrb[0].mxu0 %v1419
    %v1487 = vpop.f32.mrb[0].mxu0
    %v1488 = vadd.f32 %v1417, %v1487
    %v1489 = vpop.f32.mrb[0].mxu0
    %1490 = vdwg.mxu0
    %v1491 = vxor.u32 %v1488, 2147483648
    %v1492 = vmul.f32 %v1491, 1.442695
    %v1493 = vpow.pop %v1492
    %v1494 = vadd.f32 %v1493, 1.0
    %v1495 = vrcp.pop %v1494
    %v1496 = vmul.f32 1.0, %v1495
    %1497 = vrot.lane.b32.xlu0 %v1413, 32
    %v1498 = vpop.permute.xlu0 %1497
    %v1500 = vmul.f32 %v1496, %v1498
    %1502 = vrot.lane.b32.xlu0 %v1500, 96
    %v1503 = vpop.permute.xlu0 %1502
    %1505 = vrot.lane.b32.xlu0 %v1417, 64
    %v1506 = vpop.permute.xlu0 %1505
    %v1508 = vsel %vm221, %v1503, 0
    %1510 = vmatprep.subr.mxu0 0.0
    %1511 = vmatpush1.msra.mxu0 %v215
    %1512 = vmatprep.subr.mxu0 0.0
    %1513 = vmatpush1.msra.mxu0 %v216
    %1514 = vmatprep.subr.mxu0 0.0
    %1515 = vmatpush1.msra.mxu0 %v217
    %1516 = vmatprep.subr.mxu0 0.0
    %1517 = vmatpush1.msra.mxu0 %v218
    %1518 = vmatprep.subr.mxu0 0.0
    %1519 = vmatpush1.msra.mxu0 0.0
    %1520 = vmatprep.subr.mxu0 0.0
    %1521 = vmatpush1.msra.mxu0 0.0
    %1522 = vmatprep.subr.mxu0 0.0
    %1523 = vmatpush1.msra.mxu0 0.0
    %1524 = vmatprep.subr.mxu0 0.0
    %1525 = vmatpush1.msra.mxu0 0.0
    %1526 = vmatprep.subr.mxu0 0.0
    %1527 = vmatpush1.msra.mxu0 0.0
    %1528 = vmatprep.subr.mxu0 0.0
    %1529 = vmatpush1.msra.mxu0 0.0
    %1530 = vmatprep.subr.mxu0 0.0
    %1531 = vmatpush1.msra.mxu0 0.0
    %1532 = vmatprep.subr.mxu0 0.0
    %1533 = vmatpush1.msra.mxu0 0.0
    %1534 = vmatprep.subr.mxu0 0.0
    %1535 = vmatpush1.msra.mxu0 0.0
    %1536 = vmatprep.subr.mxu0 0.0
    %1537 = vmatpush1.msra.mxu0 0.0
    %1538 = vmatprep.subr.mxu0 0.0
    %1539 = vmatpush1.msra.mxu0 0.0
    %1540 = vmatprep.subr.mxu0 0.0
    %1541 = vmatpush1.msra.mxu0 0.0
    %1542 = vmatprep.subr.mxu0 0.0
    %1543 = vmatpush1.msra.mxu0 0.0
    %1544 = vmatprep.subr.mxu0 0.0
    %1545 = vmatpush1.msra.mxu0 0.0
    %1546 = vmatprep.subr.mxu0 0.0
    %1547 = vmatpush1.msra.mxu0 0.0
    %1548 = vmatprep.subr.mxu0 0.0
    %1549 = vmatpush1.msra.mxu0 0.0
    %1550 = vmatprep.subr.mxu0 0.0
    %1551 = vmatpush1.msra.mxu0 0.0
    %1552 = vmatprep.subr.mxu0 0.0
    %1553 = vmatpush1.msra.mxu0 0.0
    %1554 = vmatprep.subr.mxu0 0.0
    %1555 = vmatpush1.msra.mxu0 0.0
    %1556 = vmatprep.subr.mxu0 0.0
    %1557 = vmatpush1.msra.mxu0 0.0
    %1558 = vmatprep.subr.mxu0 0.0
    %1559 = vmatpush1.msra.mxu0 0.0
    %1560 = vmatprep.subr.mxu0 0.0
    %1561 = vmatpush1.msra.mxu0 0.0
    %1562 = vmatprep.subr.mxu0 0.0
    %1563 = vmatpush1.msra.mxu0 0.0
    %1564 = vmatprep.subr.mxu0 0.0
    %1565 = vmatpush1.msra.mxu0 0.0
    %1566 = vmatprep.subr.mxu0 0.0
    %1567 = vmatpush1.msra.mxu0 0.0
    %1568 = vmatprep.subr.mxu0 0.0
    %1569 = vmatpush1.msra.mxu0 0.0
    %1570 = vmatprep.subr.mxu0 0.0
    %1571 = vmatpush1.msra.mxu0 0.0
    %1572 = vmatprep.subr.mxu0 0.0
    %1573 = vmatpush1.msra.mxu0 0.0
    %1574 = vmatprep.mubr.f32.mxu0 0.0
    %1575 = vmatmul.mubr.f32.gmra.mrb[0].mxu0 %v1508
    %v1576 = vpop.f32.mrb[0].mxu0
    %v1577 = vadd.f32 %v1506, %v1576
    %v1578 = vpop.f32.mrb[0].mxu0
    %1579 = vdwg.mxu0
    %v1580 = vtanh.pop %v1577
    %v1581 = vsub.f32 1.0, %v1496
    %v1582 = vmul.f32 %v1581, %v1413
    %v1583 = vmul.f32 %v1496, %v1580
    %v1584 = vadd.f32 %v1582, %v1583
    %s1585 = scalar_lea.vmem [#allocation3], 56
    %1586 = vst.msk [vmem:[%s1585] sm:$0xff] %vm221, %v1584
    %v1587 = vld [vmem:[#allocation3] sm:$0xff]
    %v1588 = vld [vmem:[#allocation3 + $0x8] sm:$0xff]
    %v1589 = vld [vmem:[#allocation3 + $0x10] sm:$0xff]
    %v1590 = vld [vmem:[#allocation3 + $0x18] sm:$0xff]
    %v1591 = vld [vmem:[#allocation3 + $0x20] sm:$0xff]
    %v1592 = vld [vmem:[#allocation3 + $0x28] sm:$0xff]
    %v1593 = vld [vmem:[#allocation3 + $0x30] sm:$0xff]
    %v1594 = vld [vmem:[#allocation3 + $0x38] sm:$0xff]
    %v1595 = vld [vmem:[%s6] sm:$0xff]
    %v1596 = vld [vmem:[%s6 + $0x8] sm:$0xff]
    %v1597 = vld [vmem:[%s6 + $0x10] sm:$0xff]
    %v1598 = vld [vmem:[%s6 + $0x18] sm:$0xff]
    %v1599 = vld [vmem:[%s7] sm:$0x1]
    %v1601 = vlaneseq
    %v1602 = vshrl.u32 %v1601, 7
    %v1603 = vsub.s32 0, %v1602
    %v1604 = vrot.slane %v1599, %v1603
    %v1607 = vsel %vm221, %v1587, 0
    %v1610 = vsel %vm221, %v1588, 0
    %v1613 = vsel %vm221, %v1589, 0
    %v1616 = vsel %vm221, %v1590, 0
    %v1619 = vsel %vm221, %v1591, 0
    %v1622 = vsel %vm221, %v1592, 0
    %v1625 = vsel %vm221, %v1593, 0
    %v1628 = vsel %vm221, %v1594, 0
    %1630 = vmatprep.subr.mxu0 0.0
    %1631 = vmatpush1.msra.mxu0 %v1595
    %1632 = vmatprep.subr.mxu0 0.0
    %1633 = vmatpush1.msra.mxu0 %v1596
    %1634 = vmatprep.subr.mxu0 0.0
    %1635 = vmatpush1.msra.mxu0 %v1597
    %1636 = vmatprep.subr.mxu0 0.0
    %1637 = vmatpush1.msra.mxu0 %v1598
    %1638 = vmatprep.subr.mxu0 0.0
    %1639 = vmatpush1.msra.mxu0 0.0
    %1640 = vmatprep.subr.mxu0 0.0
    %1641 = vmatpush1.msra.mxu0 0.0
    %1642 = vmatprep.subr.mxu0 0.0
    %1643 = vmatpush1.msra.mxu0 0.0
    %1644 = vmatprep.subr.mxu0 0.0
    %1645 = vmatpush1.msra.mxu0 0.0
    %1646 = vmatprep.subr.mxu0 0.0
    %1647 = vmatpush1.msra.mxu0 0.0
    %1648 = vmatprep.subr.mxu0 0.0
    %1649 = vmatpush1.msra.mxu0 0.0
    %1650 = vmatprep.subr.mxu0 0.0
    %1651 = vmatpush1.msra.mxu0 0.0
    %1652 = vmatprep.subr.mxu0 0.0
    %1653 = vmatpush1.msra.mxu0 0.0
    %1654 = vmatprep.subr.mxu0 0.0
    %1655 = vmatpush1.msra.mxu0 0.0
    %1656 = vmatprep.subr.mxu0 0.0
    %1657 = vmatpush1.msra.mxu0 0.0
    %1658 = vmatprep.subr.mxu0 0.0
    %1659 = vmatpush1.msra.mxu0 0.0
    %1660 = vmatprep.subr.mxu0 0.0
    %1661 = vmatpush1.msra.mxu0 0.0
    %1662 = vmatprep.subr.mxu0 0.0
    %1663 = vmatpush1.msra.mxu0 0.0
    %1664 = vmatprep.subr.mxu0 0.0
    %1665 = vmatpush1.msra.mxu0 0.0
    %1666 = vmatprep.subr.mxu0 0.0
    %1667 = vmatpush1.msra.mxu0 0.0
    %1668 = vmatprep.subr.mxu0 0.0
    %1669 = vmatpush1.msra.mxu0 0.0
    %1670 = vmatprep.subr.mxu0 0.0
    %1671 = vmatpush1.msra.mxu0 0.0
    %1672 = vmatprep.subr.mxu0 0.0
    %1673 = vmatpush1.msra.mxu0 0.0
    %1674 = vmatprep.subr.mxu0 0.0
    %1675 = vmatpush1.msra.mxu0 0.0
    %1676 = vmatprep.subr.mxu0 0.0
    %1677 = vmatpush1.msra.mxu0 0.0
    %1678 = vmatprep.subr.mxu0 0.0
    %1679 = vmatpush1.msra.mxu0 0.0
    %1680 = vmatprep.subr.mxu0 0.0
    %1681 = vmatpush1.msra.mxu0 0.0
    %1682 = vmatprep.subr.mxu0 0.0
    %1683 = vmatpush1.msra.mxu0 0.0
    %1684 = vmatprep.subr.mxu0 0.0
    %1685 = vmatpush1.msra.mxu0 0.0
    %1686 = vmatprep.subr.mxu0 0.0
    %1687 = vmatpush1.msra.mxu0 0.0
    %1688 = vmatprep.subr.mxu0 0.0
    %1689 = vmatpush1.msra.mxu0 0.0
    %1690 = vmatprep.subr.mxu0 0.0
    %1691 = vmatpush1.msra.mxu0 0.0
    %1692 = vmatprep.subr.mxu0 0.0
    %1693 = vmatpush1.msra.mxu0 0.0
    %1694 = vmatprep.mubr.f32.mxu0 0.0
    %1695 = vmatmul.mubr.f32.gmra.mrb[0].mxu0 %v1607
    %v1696 = vpop.f32.mrb[0].mxu0
    %v1697 = vadd.f32 %v1604, %v1696
    %v1698 = vpop.f32.mrb[0].mxu0
    %1699 = vmatprep.mubr.f32.mxu0 0.0
    %1700 = vmatmul.mubr.f32.gmra.mrb[0].mxu0 %v1610
    %v1701 = vpop.f32.mrb[0].mxu0
    %v1702 = vadd.f32 %v1604, %v1701
    %v1703 = vpop.f32.mrb[0].mxu0
    %1704 = vmatprep.mubr.f32.mxu0 0.0
    %1705 = vmatmul.mubr.f32.gmra.mrb[0].mxu0 %v1613
    %v1706 = vpop.f32.mrb[0].mxu0
    %v1707 = vadd.f32 %v1604, %v1706
    %v1708 = vpop.f32.mrb[0].mxu0
    %1709 = vmatprep.mubr.f32.mxu0 0.0
    %1710 = vmatmul.mubr.f32.gmra.mrb[0].mxu0 %v1616
    %v1711 = vpop.f32.mrb[0].mxu0
    %v1712 = vadd.f32 %v1604, %v1711
    %v1713 = vpop.f32.mrb[0].mxu0
    %1714 = vmatprep.mubr.f32.mxu0 0.0
    %1715 = vmatmul.mubr.f32.gmra.mrb[0].mxu0 %v1619
    %v1716 = vpop.f32.mrb[0].mxu0
    %v1717 = vadd.f32 %v1604, %v1716
    %v1718 = vpop.f32.mrb[0].mxu0
    %1719 = vmatprep.mubr.f32.mxu0 0.0
    %1720 = vmatmul.mubr.f32.gmra.mrb[0].mxu0 %v1622
    %v1721 = vpop.f32.mrb[0].mxu0
    %v1722 = vadd.f32 %v1604, %v1721
    %v1723 = vpop.f32.mrb[0].mxu0
    %1724 = vmatprep.mubr.f32.mxu0 0.0
    %1725 = vmatmul.mubr.f32.gmra.mrb[0].mxu0 %v1625
    %v1726 = vpop.f32.mrb[0].mxu0
    %v1727 = vadd.f32 %v1604, %v1726
    %v1728 = vpop.f32.mrb[0].mxu0
    %1729 = vmatprep.mubr.f32.mxu0 0.0
    %1730 = vmatmul.mubr.f32.gmra.mrb[0].mxu0 %v1628
    %v1731 = vpop.f32.mrb[0].mxu0
    %v1732 = vadd.f32 %v1604, %v1731
    %v1733 = vpop.f32.mrb[0].mxu0
    %1734 = vdwg.mxu0
    %1735 = vst [vmem:[#allocation9] sm:$0xff] %v1697
    %1736 = vst [vmem:[#allocation9 + $0x8] sm:$0xff] %v1702
    %1737 = vst [vmem:[#allocation9 + $0x10] sm:$0xff] %v1707
    %1738 = vst [vmem:[#allocation9 + $0x18] sm:$0xff] %v1712
    %1739 = vst [vmem:[#allocation9 + $0x20] sm:$0xff] %v1717
    %1740 = vst [vmem:[#allocation9 + $0x28] sm:$0xff] %v1722
    %1741 = vst [vmem:[#allocation9 + $0x30] sm:$0xff] %v1727
    %1742 = vst [vmem:[#allocation9 + $0x38] sm:$0xff] %v1732
    // Predicated region
    $region42: #{tpu_custom_call.1} parent=1 // pred_check
      _
    $region43: #{tpu_custom_call.1} parent=1 // pred_check_branch
      %1744 = sbr.rel (0) target = $region45
    $region44: #{tpu_custom_call.1} parent=1 // pred_region
      %s1746 = ssub.s32 1024, 1024
      %1747 = vsyncadd [#allocation6], %s1746
      %s1748 = sshll.u32 [#allocation9], 4
      %s1749 = int_to_ptr.vmem [resolvable:$true] %s1748
      %1754 = dma.vmem_to_hbm [thread:$0]  %s1749, 1024, %s8, [#allocation6], 128, 128, 8
    $region45: #{tpu_custom_call.1} parent=1 // pred_fallthru
      _
    // Predicated region
    $region46: #{tpu_custom_call.1} parent=1 // pred_check
      _
    $region47: #{tpu_custom_call.1} parent=1 // pred_check_branch
      %1756 = sbr.rel (0) target = $region49
    $region48: #{tpu_custom_call.1} parent=1 // pred_region
      %1757 = dma.done [#allocation6], 1024
    $region49: #{tpu_custom_call.1} parent=1 // pred_fallthru
      _
    %1758 = vsyncpa [#allocation5], 1
    %1759 = vsyncpa [#allocation8], 1
    %1760 = vsyncpa [#allocation6], 1

</llo_original>
